<compile_context>
chip_gen: v6e
topology: v6e:2x2x1
jax: 0.10.0
libtpu: 0.0.40
codegen_flags: <defaults>
</compile_context>

<pallas_src>
import functools

import jax
import jax.numpy as jnp
import numpy as np
from jax.experimental import pallas as pl
from jax.experimental.pallas import tpu as pltpu


_CHANNEL_CHUNK = 8  # one f32 sublane tile


def vae_kernel(x_ref, conv_ref, bias_ref, w1_ref, wh_ref, wd1_ref, wd2_ref,
               recon_ref, ml_ref, *, latent_size):
    f32 = jnp.float32
    TB, C, S = x_ref.shape
    mid = w1_ref.shape[1]
    LP = wh_ref.shape[1]                       # padded head width (>= 128)
    CC = _CHANNEL_CHUNK

    # ---- packed small params --------------------------------------------
    conv = conv_ref[...]                       # (C, 128): cols [wce, wcd, bcd]
    wce = conv[:, 0:1]                         # (C, 1) conv_enc weight
    wcd = conv[:, 1:2]                         # (C, 1) conv_dec weight
    bcd = conv[:, 2:3]                         # (C, 1) conv_dec bias

    bias = bias_ref[...]                       # (5, P) lane-major bias slab
    b1 = bias[0:1, :mid]                       # (1, mid) linear_enc bias
    bh = bias[1:2, :LP]                        # (1, LP)  [bmu | bsigm | 0pad]
    bd1 = bias[2:3, :mid]                      # (1, mid) linear_dec1 bias
    bd2 = bias[3:4, :S]                        # (1, S)   linear_dec2 bias
    bce = bias[4:5, 0:1]                       # (1, 1)   conv_enc bias

    # ---------------- encode ----------------
    # conv_enc: Conv2d(64 -> 1, k=1) == per-pixel channel reduction.  Chunked
    # over 8-channel sublane groups so no (TB, C, S) temporary materializes.
    h0 = jnp.zeros((TB, S), f32)
    for c0 in range(0, C, CC):
        xc = x_ref[:, c0:c0 + CC, :]                           # (TB, CC, S)
        wc = wce[c0:c0 + CC, :]                                # (CC, 1)
        h0 = h0 + jnp.sum(xc * wc[None, :, :], axis=1)
    h0 = jnp.maximum(h0 + bce, 0.0)                            # relu + flatten

    h1 = jnp.dot(h0, w1_ref[...], preferred_element_type=f32) + b1
    h1 = jnp.maximum(h1, 0.0)                                  # (TB, mid)

    # merged, lane-padded latent heads: one (mid, 128) matmul -> [mu|logvar|0]
    ml = jnp.dot(h1, wh_ref[...], preferred_element_type=f32) + bh
    lane = jax.lax.broadcasted_iota(jnp.int32, ml.shape, 1)
    ml = jnp.where(lane >= latent_size, jnp.maximum(ml, 0.0), ml)  # clamp(logvar,0)
    ml_ref[...] = ml[:, None, :]                               # (TB, 1, LP)

    # ---------------- reparameterize ----------------
    # TODO(synk): training-mode reparameterize draws eps ~ N(0,1) (randn_like);
    # the deterministic eval path (z = mu) is implemented: wd1 is zero-padded
    # past the first `latent_size` rows, so contracting the full ml tile below
    # only picks up the mu lanes.

    # ---------------- decode ----------------
    d1 = jnp.dot(ml, wd1_ref[...], preferred_element_type=f32) + bd1
    d1 = jnp.maximum(d1, 0.0)                                  # (TB, mid)
    d2 = jnp.dot(d1, wd2_ref[...], preferred_element_type=f32) + bd2
    d2 = jnp.maximum(d2, 0.0)                                  # (TB, S)

    # conv_dec: Conv2d(1 -> 64, k=1) + sigmoid, chunked per 8 channels.
    # Sigmoid as exp(-x) then EUP approx reciprocal (no f32 VALU divide over
    # the largest tensor); stores are full-lane / 8-sublane (unmasked vst).
    for c0 in range(0, C, CC):
        wc = wcd[c0:c0 + CC, :]                                # (CC, 1)
        bc = bcd[c0:c0 + CC, :]                                # (CC, 1)
        pre = d2[:, None, :] * wc[None, :, :] + bc[None, :, :]  # (TB, CC, S)
        e = jnp.exp(-pre)
        recon_ref[:, c0:c0 + CC, :] = pl.reciprocal(1.0 + e, approx=True)


def _pick_batch_tile(B, C, S, *, big_block_budget=24 << 20, tb_cap=64):
    """VMEM-aware batch tile.

    Each batch row of x and recon costs C*S*4 bytes; with default
    double-buffering the pipeline holds 2*(x + recon) blocks = 4*C*S*4 bytes
    per row.  Size TB so that stays inside `big_block_budget`, cap it at
    `tb_cap` (v7x has only 64 MiB VMEM per TensorCore), and prefer a tile
    that leaves >= 2 grid steps so the "parallel" batch axis can shard across
    the two v7x TensorCores (no-op on v5e/v6e).
    """
    per_row = 4 * C * S * 4
    tb_max = max(1, min(tb_cap, big_block_budget // per_row, B))
    divisors = [t for t in range(1, tb_max + 1) if B % t == 0]
    multi_step = [t for t in divisors if B // t >= 2]
    return max(multi_step) if multi_step else max(divisors)


@functools.partial(jax.jit, static_argnames=("latent_size",))
def vae_forward(x_nchw, packed, *, latent_size):
    convp, bias, w1, wh, wd1, wd2 = packed
    B, C, H, W = x_nchw.shape
    S = H * W
    mid = w1.shape[1]
    LP = wh.shape[1]                            # padded head width (>= 128)
    L = latent_size
    assert w1.shape[0] == S, "in_size must equal H*W"
    assert C % _CHANNEL_CHUNK == 0

    x3 = x_nchw.reshape(B, C, S)                # free NCHW reshape
    TB = _pick_batch_tile(B, C, S)
    grid = (B // TB,)

    def resident(shape):
        return pl.BlockSpec(shape, lambda b: (0,) * len(shape))

    kernel = functools.partial(vae_kernel, latent_size=L)

    # advisory cost estimate for the XLA scheduler (kernel is memory-bound)
    flops = 2 * B * (2 * C * S + S * mid + mid * LP + LP * mid + mid * S)
    bytes_accessed = 4 * (2 * B * C * S + B * LP + convp.size + bias.size
                          + w1.size + wh.size + wd1.size + wd2.size)
    cost = pl.CostEstimate(flops=flops, transcendentals=2 * B * C * S,
                           bytes_accessed=bytes_accessed)

    recon3, ml3 = pl.pallas_call(
        kernel,
        out_shape=(
            jax.ShapeDtypeStruct((B, C, S), jnp.float32),
            jax.ShapeDtypeStruct((B, 1, LP), jnp.float32),
        ),
        grid=grid,
        in_specs=[
            pl.BlockSpec((TB, C, S), lambda b: (b, 0, 0)),   # x: batch-tiled
            resident(convp.shape),                           # weights resident
            resident(bias.shape),
            resident(w1.shape),
            resident(wh.shape),
            resident(wd1.shape),
            resident(wd2.shape),
        ],
        out_specs=(
            pl.BlockSpec((TB, C, S), lambda b: (b, 0, 0)),   # recon
            pl.BlockSpec((TB, 1, LP), lambda b: (b, 0, 0)),  # [mu|logvar|pad]
        ),
        compiler_params=pltpu.CompilerParams(
            dimension_semantics=("parallel",),
            vmem_limit_bytes=48 << 20,
        ),
        cost_estimate=cost,
    )(x3, convp, bias, w1, wd1 * 0 + wd1 if False else wh, wd1, wd2)[:] if False else pl.pallas_call(
        kernel,
        out_shape=(
            jax.ShapeDtypeStruct((B, C, S), jnp.float32),
            jax.ShapeDtypeStruct((B, 1, LP), jnp.float32),
        ),
        grid=grid,
        in_specs=[
            pl.BlockSpec((TB, C, S), lambda b: (b, 0, 0)),
            resident(convp.shape),
            resident(bias.shape),
            resident(w1.shape),
            resident(wh.shape),
            resident(wd1.shape),
            resident(wd2.shape),
        ],
        out_specs=(
            pl.BlockSpec((TB, C, S), lambda b: (b, 0, 0)),
            pl.BlockSpec((TB, 1, LP), lambda b: (b, 0, 0)),
        ),
        compiler_params=pltpu.CompilerParams(
            dimension_semantics=("parallel",),
            vmem_limit_bytes=48 << 20,
        ),
        cost_estimate=cost,
    )(x3, convp, bias, w1, wh, wd1, wd2)

    recon = recon3.reshape(B, C, H, W)
    ml = ml3.reshape(B, LP)
    mu = ml[:, :L]
    logvar = ml[:, L:2 * L]
    return recon, mu, logvar


def init_params(key, in_size, mid_size, latent_size, channels):
    """Deterministic PyTorch-default-style init (uniform +-1/sqrt(fan_in)).

    Linear weights are stored as (in, out); biases as (out,); the 1x1 conv
    weights/biases as flat (C,) / scalar.
    """
    ks = jax.random.split(key, 14)

    def u(k, shape, fan_in):
        bound = 1.0 / float(fan_in) ** 0.5
        return jax.random.uniform(k, shape, jnp.float32, -bound, bound)

    wce = u(ks[0], (channels,), channels)              # conv_enc weight (1,64,1,1)
    bce = u(ks[1], (), channels)                       # conv_enc bias
    w1 = u(ks[2], (in_size, mid_size), in_size)        # linear_enc
    b1 = u(ks[3], (mid_size,), in_size)
    wmu = u(ks[4], (mid_size, latent_size), mid_size)  # linear_enc_mu
    bmu = u(ks[5], (latent_size,), mid_size)
    wsg = u(ks[6], (mid_size, latent_size), mid_size)  # linear_enc_sigm
    bsg = u(ks[7], (latent_size,), mid_size)
    wd1 = u(ks[8], (latent_size, mid_size), latent_size)   # linear_dec1
    bd1 = u(ks[9], (mid_size,), latent_size)
    wd2 = u(ks[10], (mid_size, in_size), mid_size)     # linear_dec2
    bd2 = u(ks[11], (in_size,), mid_size)
    wcd = u(ks[12], (channels,), 1)                    # conv_dec weight (64,1,1,1)
    bcd = u(ks[13], (channels,), 1)                    # conv_dec bias (64,)
    return (wce, bce, w1, b1, wmu, bmu, wsg, bsg,
            wd1, bd1, wd2, bd2, wcd, bcd)


def pack_params(params):
    """Pack the 13 small params into 2 arrays + 4 matmul weights.

    conv slab:  (C, 128) sublane-major, cols = [wce, wcd, bcd]
    bias slab:  (5, P)   lane-major rows = [b1, bmu|bsg, bd1, bd2, bce]
    heads:      [wmu | wsg] zero-padded to LP(>=128) output lanes
    dec1:       wd1 zero-padded to LP input rows (so dot(ml, wd1p) == mu @ wd1)
    """
    (wce, bce, w1, b1, wmu, bmu, wsg, bsg,
     wd1, bd1, wd2, bd2, wcd, bcd) = params
    C = wce.shape[0]
    mid = w1.shape[1]
    in_size = w1.shape[0]
    L = wmu.shape[1]
    LP = max(128, ((2 * L + 127) // 128) * 128)
    P = ((max(mid, in_size, LP) + 127) // 128) * 128

    def row(v):
        v = v.astype(jnp.float32)
        return jnp.pad(v, (0, P - v.shape[0]))

    bias = jnp.stack([
        row(b1),
        row(jnp.concatenate([bmu, bsg])),
        row(bd1),
        row(bd2),
        row(jnp.reshape(bce, (1,))),
    ])                                                 # (5, P)
    convp = jnp.zeros((C, 128), jnp.float32)
    convp = convp.at[:, 0].set(wce).at[:, 1].set(wcd).at[:, 2].set(bcd)
    wheads = jnp.concatenate([wmu, wsg], axis=1)       # (mid, 2L)
    wheads = jnp.pad(wheads, ((0, 0), (0, LP - 2 * L)))  # (mid, LP)
    wd1p = jnp.pad(wd1, ((0, LP - L), (0, 0)))         # (LP, mid)
    return (convp, bias, w1, wheads, wd1p, wd2)


def vae_reference(x_nchw, params):
    """Pure-JAX reference mirroring the PyTorch forward (eval mode)."""
    (wce, bce, w1, b1, wmu, bmu, wsg, bsg,
     wd1, bd1, wd2, bd2, wcd, bcd) = params
    B, C, H, W = x_nchw.shape
    x3 = x_nchw.reshape(B, C, H * W)
    h0 = jnp.maximum(jnp.einsum('bcs,c->bs', x3, wce) + bce, 0.0)
    h1 = jnp.maximum(h0 @ w1 + b1, 0.0)
    mu = h1 @ wmu + bmu
    logvar = jnp.maximum(h1 @ wsg + bsg, 0.0)
    z = mu
    d1 = jnp.maximum(z @ wd1 + bd1, 0.0)
    d2 = jnp.maximum(d1 @ wd2 + bd2, 0.0)
    recon = jax.nn.sigmoid(d2[:, None, :] * wcd[None, :, None]
                           + bcd[None, :, None]).reshape(B, C, H, W)
    return recon, mu, logvar


if __name__ == "__main__":
    # Small shapes consistent with the module: conv channels fixed at 64 by
    # the PyTorch spec, spatial 16x16 -> in_size = 256, mid = 128, latent = 2.
    B, C, H, W = 2, 64, 16, 16
    in_size = H * W
    mid_size = 128
    latent_size = 2

    key = jax.random.PRNGKey(0)
    kx, kp = jax.random.split(key)
    x = jax.random.normal(kx, (B, C, H, W), jnp.float32)
    params = init_params(kp, in_size, mid_size, latent_size, C)
    packed = pack_params(params)

    recon, mu, logvar = vae_forward(x, packed, latent_size=latent_size)
    jax.block_until_ready((recon, mu, logvar))

    assert recon.shape == (B, C, H, W)
    assert mu.shape == (B, latent_size) and logvar.shape == (B, latent_size)

    ref_recon, ref_mu, ref_lv = vae_reference(x, params)
    np.testing.assert_allclose(np.asarray(mu), np.asarray(ref_mu),
                               rtol=2e-3, atol=2e-3)
    np.testing.assert_allclose(np.asarray(logvar), np.asarray(ref_lv),
                               rtol=2e-3, atol=2e-3)
    np.testing.assert_allclose(np.asarray(recon), np.asarray(ref_recon),
                               rtol=2e-3, atol=2e-3)

    print("KERNEL_OK")
</pallas_src>

<mosaic_0001>
module attributes {stable_mosaic.version = 11 : i64} {
  func.func @vae_kernel(%arg0: i32, %arg1: memref<1x64x256xf32, #tpu.memory_space<vmem>>, %arg2: memref<64x128xf32, #tpu.memory_space<vmem>>, %arg3: memref<5x256xf32, #tpu.memory_space<vmem>>, %arg4: memref<256x128xf32, #tpu.memory_space<vmem>>, %arg5: memref<128x128xf32, #tpu.memory_space<vmem>>, %arg6: memref<128x128xf32, #tpu.memory_space<vmem>>, %arg7: memref<128x256xf32, #tpu.memory_space<vmem>>, %arg8: memref<1x64x256xf32, #tpu.memory_space<vmem>>, %arg9: memref<1x1x128xf32, #tpu.memory_space<vmem>>) attributes {dimension_semantics = [#tpu.dimension_semantics<parallel>], iteration_bounds = array<i64: 2>, scalar_prefetch = 0 : i64, scratch_operands = 0 : i64, tpu.core_type = #tpu.core_type<tc>, window_params = [{transform_indices = @transform_0, window_bounds = array<i64: 1, 64, 256>}, {pipeline_mode = #tpu.pipeline_mode<synchronous>, transform_indices = @transform_1, window_bounds = array<i64: 64, 128>}, {pipeline_mode = #tpu.pipeline_mode<synchronous>, transform_indices = @transform_2, window_bounds = array<i64: 5, 256>}, {pipeline_mode = #tpu.pipeline_mode<synchronous>, transform_indices = @transform_3, window_bounds = array<i64: 256, 128>}, {pipeline_mode = #tpu.pipeline_mode<synchronous>, transform_indices = @transform_4, window_bounds = array<i64: 128, 128>}, {pipeline_mode = #tpu.pipeline_mode<synchronous>, transform_indices = @transform_5, window_bounds = array<i64: 128, 128>}, {pipeline_mode = #tpu.pipeline_mode<synchronous>, transform_indices = @transform_6, window_bounds = array<i64: 128, 256>}, {transform_indices = @transform_7, window_bounds = array<i64: 1, 64, 256>}, {transform_indices = @transform_8, window_bounds = array<i64: 1, 1, 128>}]} {
    %c0 = arith.constant 0 : index
    %c0_0 = arith.constant 0 : index
    %0 = vector.load %arg2[%c0, %c0_0] : memref<64x128xf32, #tpu.memory_space<vmem>>, vector<64x128xf32>
    %1 = vector.extract_strided_slice %0 {offsets = [0, 0], sizes = [64, 1], strides = [1, 1]} : vector<64x128xf32> to vector<64x1xf32>
    %2 = vector.extract_strided_slice %0 {offsets = [0, 1], sizes = [64, 1], strides = [1, 1]} : vector<64x128xf32> to vector<64x1xf32>
    %3 = vector.extract_strided_slice %0 {offsets = [0, 2], sizes = [64, 1], strides = [1, 1]} : vector<64x128xf32> to vector<64x1xf32>
    %c0_1 = arith.constant 0 : index
    %c0_2 = arith.constant 0 : index
    %4 = vector.load %arg3[%c0_1, %c0_2] : memref<5x256xf32, #tpu.memory_space<vmem>>, vector<5x256xf32>
    %5 = vector.extract_strided_slice %4 {offsets = [0, 0], sizes = [1, 128], strides = [1, 1]} : vector<5x256xf32> to vector<1x128xf32>
    %6 = vector.extract_strided_slice %4 {offsets = [1, 0], sizes = [1, 128], strides = [1, 1]} : vector<5x256xf32> to vector<1x128xf32>
    %7 = vector.extract_strided_slice %4 {offsets = [2, 0], sizes = [1, 128], strides = [1, 1]} : vector<5x256xf32> to vector<1x128xf32>
    %8 = vector.extract_strided_slice %4 {offsets = [3, 0], sizes = [1, 256], strides = [1, 1]} : vector<5x256xf32> to vector<1x256xf32>
    %9 = vector.extract_strided_slice %4 {offsets = [4, 0], sizes = [1, 1], strides = [1, 1]} : vector<5x256xf32> to vector<1x1xf32>
    %cst = arith.constant 0.000000e+00 : f32
    %10 = vector.broadcast %cst : f32 to vector<1x256xf32>
    %c0_3 = arith.constant 0 : index
    %c0_4 = arith.constant 0 : index
    %c0_5 = arith.constant 0 : index
    %11 = vector.load %arg1[%c0_3, %c0_4, %c0_5] : memref<1x64x256xf32, #tpu.memory_space<vmem>>, vector<1x8x256xf32>
    %12 = vector.extract_strided_slice %1 {offsets = [0, 0], sizes = [8, 1], strides = [1, 1]} : vector<64x1xf32> to vector<8x1xf32>
    %13 = vector.shape_cast %12 : vector<8x1xf32> to vector<1x8x1xf32>
    %14 = vector.broadcast %13 : vector<1x8x1xf32> to vector<1x8x256xf32>
    %15 = arith.mulf %11, %14 : vector<1x8x256xf32>
    %cst_6 = arith.constant dense<0.000000e+00> : vector<1x256xf32>
    %16 = vector.multi_reduction <add>, %15, %cst_6 [1] : vector<1x8x256xf32> to vector<1x256xf32>
    %17 = arith.addf %10, %16 : vector<1x256xf32>
    %c0_7 = arith.constant 0 : index
    %c8 = arith.constant 8 : index
    %c0_8 = arith.constant 0 : index
    %18 = vector.load %arg1[%c0_7, %c8, %c0_8] : memref<1x64x256xf32, #tpu.memory_space<vmem>>, vector<1x8x256xf32>
    %19 = vector.extract_strided_slice %1 {offsets = [8, 0], sizes = [8, 1], strides = [1, 1]} : vector<64x1xf32> to vector<8x1xf32>
    %20 = vector.shape_cast %19 : vector<8x1xf32> to vector<1x8x1xf32>
    %21 = vector.broadcast %20 : vector<1x8x1xf32> to vector<1x8x256xf32>
    %22 = arith.mulf %18, %21 : vector<1x8x256xf32>
    %cst_9 = arith.constant dense<0.000000e+00> : vector<1x256xf32>
    %23 = vector.multi_reduction <add>, %22, %cst_9 [1] : vector<1x8x256xf32> to vector<1x256xf32>
    %24 = arith.addf %17, %23 : vector<1x256xf32>
    %c0_10 = arith.constant 0 : index
    %c16 = arith.constant 16 : index
    %c0_11 = arith.constant 0 : index
    %25 = vector.load %arg1[%c0_10, %c16, %c0_11] : memref<1x64x256xf32, #tpu.memory_space<vmem>>, vector<1x8x256xf32>
    %26 = vector.extract_strided_slice %1 {offsets = [16, 0], sizes = [8, 1], strides = [1, 1]} : vector<64x1xf32> to vector<8x1xf32>
    %27 = vector.shape_cast %26 : vector<8x1xf32> to vector<1x8x1xf32>
    %28 = vector.broadcast %27 : vector<1x8x1xf32> to vector<1x8x256xf32>
    %29 = arith.mulf %25, %28 : vector<1x8x256xf32>
    %cst_12 = arith.constant dense<0.000000e+00> : vector<1x256xf32>
    %30 = vector.multi_reduction <add>, %29, %cst_12 [1] : vector<1x8x256xf32> to vector<1x256xf32>
    %31 = arith.addf %24, %30 : vector<1x256xf32>
    %c0_13 = arith.constant 0 : index
    %c24 = arith.constant 24 : index
    %c0_14 = arith.constant 0 : index
    %32 = vector.load %arg1[%c0_13, %c24, %c0_14] : memref<1x64x256xf32, #tpu.memory_space<vmem>>, vector<1x8x256xf32>
    %33 = vector.extract_strided_slice %1 {offsets = [24, 0], sizes = [8, 1], strides = [1, 1]} : vector<64x1xf32> to vector<8x1xf32>
    %34 = vector.shape_cast %33 : vector<8x1xf32> to vector<1x8x1xf32>
    %35 = vector.broadcast %34 : vector<1x8x1xf32> to vector<1x8x256xf32>
    %36 = arith.mulf %32, %35 : vector<1x8x256xf32>
    %cst_15 = arith.constant dense<0.000000e+00> : vector<1x256xf32>
    %37 = vector.multi_reduction <add>, %36, %cst_15 [1] : vector<1x8x256xf32> to vector<1x256xf32>
    %38 = arith.addf %31, %37 : vector<1x256xf32>
    %c0_16 = arith.constant 0 : index
    %c32 = arith.constant 32 : index
    %c0_17 = arith.constant 0 : index
    %39 = vector.load %arg1[%c0_16, %c32, %c0_17] : memref<1x64x256xf32, #tpu.memory_space<vmem>>, vector<1x8x256xf32>
    %40 = vector.extract_strided_slice %1 {offsets = [32, 0], sizes = [8, 1], strides = [1, 1]} : vector<64x1xf32> to vector<8x1xf32>
    %41 = vector.shape_cast %40 : vector<8x1xf32> to vector<1x8x1xf32>
    %42 = vector.broadcast %41 : vector<1x8x1xf32> to vector<1x8x256xf32>
    %43 = arith.mulf %39, %42 : vector<1x8x256xf32>
    %cst_18 = arith.constant dense<0.000000e+00> : vector<1x256xf32>
    %44 = vector.multi_reduction <add>, %43, %cst_18 [1] : vector<1x8x256xf32> to vector<1x256xf32>
    %45 = arith.addf %38, %44 : vector<1x256xf32>
    %c0_19 = arith.constant 0 : index
    %c40 = arith.constant 40 : index
    %c0_20 = arith.constant 0 : index
    %46 = vector.load %arg1[%c0_19, %c40, %c0_20] : memref<1x64x256xf32, #tpu.memory_space<vmem>>, vector<1x8x256xf32>
    %47 = vector.extract_strided_slice %1 {offsets = [40, 0], sizes = [8, 1], strides = [1, 1]} : vector<64x1xf32> to vector<8x1xf32>
    %48 = vector.shape_cast %47 : vector<8x1xf32> to vector<1x8x1xf32>
    %49 = vector.broadcast %48 : vector<1x8x1xf32> to vector<1x8x256xf32>
    %50 = arith.mulf %46, %49 : vector<1x8x256xf32>
    %cst_21 = arith.constant dense<0.000000e+00> : vector<1x256xf32>
    %51 = vector.multi_reduction <add>, %50, %cst_21 [1] : vector<1x8x256xf32> to vector<1x256xf32>
    %52 = arith.addf %45, %51 : vector<1x256xf32>
    %c0_22 = arith.constant 0 : index
    %c48 = arith.constant 48 : index
    %c0_23 = arith.constant 0 : index
    %53 = vector.load %arg1[%c0_22, %c48, %c0_23] : memref<1x64x256xf32, #tpu.memory_space<vmem>>, vector<1x8x256xf32>
    %54 = vector.extract_strided_slice %1 {offsets = [48, 0], sizes = [8, 1], strides = [1, 1]} : vector<64x1xf32> to vector<8x1xf32>
    %55 = vector.shape_cast %54 : vector<8x1xf32> to vector<1x8x1xf32>
    %56 = vector.broadcast %55 : vector<1x8x1xf32> to vector<1x8x256xf32>
    %57 = arith.mulf %53, %56 : vector<1x8x256xf32>
    %cst_24 = arith.constant dense<0.000000e+00> : vector<1x256xf32>
    %58 = vector.multi_reduction <add>, %57, %cst_24 [1] : vector<1x8x256xf32> to vector<1x256xf32>
    %59 = arith.addf %52, %58 : vector<1x256xf32>
    %c0_25 = arith.constant 0 : index
    %c56 = arith.constant 56 : index
    %c0_26 = arith.constant 0 : index
    %60 = vector.load %arg1[%c0_25, %c56, %c0_26] : memref<1x64x256xf32, #tpu.memory_space<vmem>>, vector<1x8x256xf32>
    %61 = vector.extract_strided_slice %1 {offsets = [56, 0], sizes = [8, 1], strides = [1, 1]} : vector<64x1xf32> to vector<8x1xf32>
    %62 = vector.shape_cast %61 : vector<8x1xf32> to vector<1x8x1xf32>
    %63 = vector.broadcast %62 : vector<1x8x1xf32> to vector<1x8x256xf32>
    %64 = arith.mulf %60, %63 : vector<1x8x256xf32>
    %cst_27 = arith.constant dense<0.000000e+00> : vector<1x256xf32>
    %65 = vector.multi_reduction <add>, %64, %cst_27 [1] : vector<1x8x256xf32> to vector<1x256xf32>
    %66 = arith.addf %59, %65 : vector<1x256xf32>
    %67 = vector.broadcast %9 : vector<1x1xf32> to vector<1x256xf32>
    %68 = arith.addf %66, %67 : vector<1x256xf32>
    %cst_28 = arith.constant 0.000000e+00 : f32
    %69 = vector.broadcast %cst_28 : f32 to vector<1x256xf32>
    %70 = arith.maximumf %68, %69 : vector<1x256xf32>
    %c0_29 = arith.constant 0 : index
    %c0_30 = arith.constant 0 : index
    %71 = vector.load %arg4[%c0_29, %c0_30] : memref<256x128xf32, #tpu.memory_space<vmem>>, vector<256x128xf32>
    %cst_31 = arith.constant dense<0.000000e+00> : vector<1x128xf32>
    %72 = tpu.matmul %70, %71, %cst_31 {dimension_numbers = #tpu.dot_dimension_numbers<[1], [0], [0], [1], [0, 0, 1, 1], [], []>} : vector<1x256xf32>, vector<256x128xf32>, vector<1x128xf32> -> vector<1x128xf32>
    %73 = arith.addf %72, %5 : vector<1x128xf32>
    %cst_32 = arith.constant 0.000000e+00 : f32
    %74 = vector.broadcast %cst_32 : f32 to vector<1x128xf32>
    %75 = arith.maximumf %73, %74 : vector<1x128xf32>
    %c0_33 = arith.constant 0 : index
    %c0_34 = arith.constant 0 : index
    %76 = vector.load %arg5[%c0_33, %c0_34] : memref<128x128xf32, #tpu.memory_space<vmem>>, vector<128x128xf32>
    %cst_35 = arith.constant dense<0.000000e+00> : vector<1x128xf32>
    %77 = tpu.matmul %75, %76, %cst_35 {dimension_numbers = #tpu.dot_dimension_numbers<[1], [0], [0], [1], [0, 0, 1, 1], [], []>} : vector<1x128xf32>, vector<128x128xf32>, vector<1x128xf32> -> vector<1x128xf32>
    %78 = arith.addf %77, %6 : vector<1x128xf32>
    %79 = tpu.iota {dimensions = array<i32: 1>} : vector<1x128xi32>
    %c2_i32 = arith.constant 2 : i32
    %80 = vector.broadcast %c2_i32 : i32 to vector<1x128xi32>
    %81 = arith.cmpi sge, %79, %80 : vector<1x128xi32>
    %cst_36 = arith.constant 0.000000e+00 : f32
    %82 = vector.broadcast %cst_36 : f32 to vector<1x128xf32>
    %83 = arith.maximumf %78, %82 : vector<1x128xf32>
    %84 = arith.select %81, %83, %78 : vector<1x128xi1>, vector<1x128xf32>
    %85 = vector.shape_cast %84 : vector<1x128xf32> to vector<1x1x128xf32>
    %c0_37 = arith.constant 0 : index
    %c0_38 = arith.constant 0 : index
    %c0_39 = arith.constant 0 : index
    %86 = vector.load %arg9[%c0_37, %c0_38, %c0_39] : memref<1x1x128xf32, #tpu.memory_space<vmem>>, vector<1x1x128xf32>
    tpu.vector_store %arg9[%c0_37, %c0_38, %c0_39], %85 {strides = array<i32>} : memref<1x1x128xf32, #tpu.memory_space<vmem>>, vector<1x1x128xf32>,
    %c0_40 = arith.constant 0 : index
    %c0_41 = arith.constant 0 : index
    %87 = vector.load %arg6[%c0_40, %c0_41] : memref<128x128xf32, #tpu.memory_space<vmem>>, vector<128x128xf32>
    %cst_42 = arith.constant dense<0.000000e+00> : vector<1x128xf32>
    %88 = tpu.matmul %84, %87, %cst_42 {dimension_numbers = #tpu.dot_dimension_numbers<[1], [0], [0], [1], [0, 0, 1, 1], [], []>} : vector<1x128xf32>, vector<128x128xf32>, vector<1x128xf32> -> vector<1x128xf32>
    %89 = arith.addf %88, %7 : vector<1x128xf32>
    %cst_43 = arith.constant 0.000000e+00 : f32
    %90 = vector.broadcast %cst_43 : f32 to vector<1x128xf32>
    %91 = arith.maximumf %89, %90 : vector<1x128xf32>
    %c0_44 = arith.constant 0 : index
    %c0_45 = arith.constant 0 : index
    %92 = vector.load %arg7[%c0_44, %c0_45] : memref<128x256xf32, #tpu.memory_space<vmem>>, vector<128x256xf32>
    %cst_46 = arith.constant dense<0.000000e+00> : vector<1x256xf32>
    %93 = tpu.matmul %91, %92, %cst_46 {dimension_numbers = #tpu.dot_dimension_numbers<[1], [0], [0], [1], [0, 0, 1, 1], [], []>} : vector<1x128xf32>, vector<128x256xf32>, vector<1x256xf32> -> vector<1x256xf32>
    %94 = arith.addf %93, %8 : vector<1x256xf32>
    %cst_47 = arith.constant 0.000000e+00 : f32
    %95 = vector.broadcast %cst_47 : f32 to vector<1x256xf32>
    %96 = arith.maximumf %94, %95 : vector<1x256xf32>
    %97 = vector.extract_strided_slice %2 {offsets = [0, 0], sizes = [8, 1], strides = [1, 1]} : vector<64x1xf32> to vector<8x1xf32>
    %98 = vector.extract_strided_slice %3 {offsets = [0, 0], sizes = [8, 1], strides = [1, 1]} : vector<64x1xf32> to vector<8x1xf32>
    %99 = vector.shape_cast %96 : vector<1x256xf32> to vector<1x1x256xf32>
    %100 = vector.shape_cast %97 : vector<8x1xf32> to vector<1x8x1xf32>
    %101 = vector.broadcast %99 : vector<1x1x256xf32> to vector<1x8x256xf32>
    %102 = vector.broadcast %100 : vector<1x8x1xf32> to vector<1x8x256xf32>
    %103 = arith.mulf %101, %102 : vector<1x8x256xf32>
    %104 = vector.shape_cast %98 : vector<8x1xf32> to vector<1x8x1xf32>
    %105 = vector.broadcast %104 : vector<1x8x1xf32> to vector<1x8x256xf32>
    %106 = arith.addf %103, %105 : vector<1x8x256xf32>
    %cst_48 = arith.constant 0.000000e+00 : f32
    %107 = vector.broadcast %cst_48 : f32 to vector<1x8x256xf32>
    %108 = arith.subf %107, %106 : vector<1x8x256xf32>
    %109 = math.exp %108 : vector<1x8x256xf32>
    %cst_49 = arith.constant 1.000000e+00 : f32
    %110 = vector.broadcast %cst_49 : f32 to vector<1x8x256xf32>
    %111 = arith.addf %110, %109 : vector<1x8x256xf32>
    %112 = tpu.reciprocal %111 {approx = true} : vector<1x8x256xf32> -> vector<1x8x256xf32>
    %c0_50 = arith.constant 0 : index
    %c0_51 = arith.constant 0 : index
    %c0_52 = arith.constant 0 : index
    %113 = vector.load %arg8[%c0_50, %c0_51, %c0_52] : memref<1x64x256xf32, #tpu.memory_space<vmem>>, vector<1x8x256xf32>
    tpu.vector_store %arg8[%c0_50, %c0_51, %c0_52], %112 {strides = array<i32>} : memref<1x64x256xf32, #tpu.memory_space<vmem>>, vector<1x8x256xf32>,
    %114 = vector.extract_strided_slice %2 {offsets = [8, 0], sizes = [8, 1], strides = [1, 1]} : vector<64x1xf32> to vector<8x1xf32>
    %115 = vector.extract_strided_slice %3 {offsets = [8, 0], sizes = [8, 1], strides = [1, 1]} : vector<64x1xf32> to vector<8x1xf32>
    %116 = vector.shape_cast %96 : vector<1x256xf32> to vector<1x1x256xf32>
    %117 = vector.shape_cast %114 : vector<8x1xf32> to vector<1x8x1xf32>
    %118 = vector.broadcast %116 : vector<1x1x256xf32> to vector<1x8x256xf32>
    %119 = vector.broadcast %117 : vector<1x8x1xf32> to vector<1x8x256xf32>
    %120 = arith.mulf %118, %119 : vector<1x8x256xf32>
    %121 = vector.shape_cast %115 : vector<8x1xf32> to vector<1x8x1xf32>
    %122 = vector.broadcast %121 : vector<1x8x1xf32> to vector<1x8x256xf32>
    %123 = arith.addf %120, %122 : vector<1x8x256xf32>
    %cst_53 = arith.constant 0.000000e+00 : f32
    %124 = vector.broadcast %cst_53 : f32 to vector<1x8x256xf32>
    %125 = arith.subf %124, %123 : vector<1x8x256xf32>
    %126 = math.exp %125 : vector<1x8x256xf32>
    %cst_54 = arith.constant 1.000000e+00 : f32
    %127 = vector.broadcast %cst_54 : f32 to vector<1x8x256xf32>
    %128 = arith.addf %127, %126 : vector<1x8x256xf32>
    %129 = tpu.reciprocal %128 {approx = true} : vector<1x8x256xf32> -> vector<1x8x256xf32>
    %c0_55 = arith.constant 0 : index
    %c8_56 = arith.constant 8 : index
    %c0_57 = arith.constant 0 : index
    %130 = vector.load %arg8[%c0_55, %c8_56, %c0_57] : memref<1x64x256xf32, #tpu.memory_space<vmem>>, vector<1x8x256xf32>
    tpu.vector_store %arg8[%c0_55, %c8_56, %c0_57], %129 {strides = array<i32>} : memref<1x64x256xf32, #tpu.memory_space<vmem>>, vector<1x8x256xf32>,
    %131 = vector.extract_strided_slice %2 {offsets = [16, 0], sizes = [8, 1], strides = [1, 1]} : vector<64x1xf32> to vector<8x1xf32>
    %132 = vector.extract_strided_slice %3 {offsets = [16, 0], sizes = [8, 1], strides = [1, 1]} : vector<64x1xf32> to vector<8x1xf32>
    %133 = vector.shape_cast %96 : vector<1x256xf32> to vector<1x1x256xf32>
    %134 = vector.shape_cast %131 : vector<8x1xf32> to vector<1x8x1xf32>
    %135 = vector.broadcast %133 : vector<1x1x256xf32> to vector<1x8x256xf32>
    %136 = vector.broadcast %134 : vector<1x8x1xf32> to vector<1x8x256xf32>
    %137 = arith.mulf %135, %136 : vector<1x8x256xf32>
    %138 = vector.shape_cast %132 : vector<8x1xf32> to vector<1x8x1xf32>
    %139 = vector.broadcast %138 : vector<1x8x1xf32> to vector<1x8x256xf32>
    %140 = arith.addf %137, %139 : vector<1x8x256xf32>
    %cst_58 = arith.constant 0.000000e+00 : f32
    %141 = vector.broadcast %cst_58 : f32 to vector<1x8x256xf32>
    %142 = arith.subf %141, %140 : vector<1x8x256xf32>
    %143 = math.exp %142 : vector<1x8x256xf32>
    %cst_59 = arith.constant 1.000000e+00 : f32
    %144 = vector.broadcast %cst_59 : f32 to vector<1x8x256xf32>
    %145 = arith.addf %144, %143 : vector<1x8x256xf32>
    %146 = tpu.reciprocal %145 {approx = true} : vector<1x8x256xf32> -> vector<1x8x256xf32>
    %c0_60 = arith.constant 0 : index
    %c16_61 = arith.constant 16 : index
    %c0_62 = arith.constant 0 : index
    %147 = vector.load %arg8[%c0_60, %c16_61, %c0_62] : memref<1x64x256xf32, #tpu.memory_space<vmem>>, vector<1x8x256xf32>
    tpu.vector_store %arg8[%c0_60, %c16_61, %c0_62], %146 {strides = array<i32>} : memref<1x64x256xf32, #tpu.memory_space<vmem>>, vector<1x8x256xf32>,
    %148 = vector.extract_strided_slice %2 {offsets = [24, 0], sizes = [8, 1], strides = [1, 1]} : vector<64x1xf32> to vector<8x1xf32>
    %149 = vector.extract_strided_slice %3 {offsets = [24, 0], sizes = [8, 1], strides = [1, 1]} : vector<64x1xf32> to vector<8x1xf32>
    %150 = vector.shape_cast %96 : vector<1x256xf32> to vector<1x1x256xf32>
    %151 = vector.shape_cast %148 : vector<8x1xf32> to vector<1x8x1xf32>
    %152 = vector.broadcast %150 : vector<1x1x256xf32> to vector<1x8x256xf32>
    %153 = vector.broadcast %151 : vector<1x8x1xf32> to vector<1x8x256xf32>
    %154 = arith.mulf %152, %153 : vector<1x8x256xf32>
    %155 = vector.shape_cast %149 : vector<8x1xf32> to vector<1x8x1xf32>
    %156 = vector.broadcast %155 : vector<1x8x1xf32> to vector<1x8x256xf32>
    %157 = arith.addf %154, %156 : vector<1x8x256xf32>
    %cst_63 = arith.constant 0.000000e+00 : f32
    %158 = vector.broadcast %cst_63 : f32 to vector<1x8x256xf32>
    %159 = arith.subf %158, %157 : vector<1x8x256xf32>
    %160 = math.exp %159 : vector<1x8x256xf32>
    %cst_64 = arith.constant 1.000000e+00 : f32
    %161 = vector.broadcast %cst_64 : f32 to vector<1x8x256xf32>
    %162 = arith.addf %161, %160 : vector<1x8x256xf32>
    %163 = tpu.reciprocal %162 {approx = true} : vector<1x8x256xf32> -> vector<1x8x256xf32>
    %c0_65 = arith.constant 0 : index
    %c24_66 = arith.constant 24 : index
    %c0_67 = arith.constant 0 : index
    %164 = vector.load %arg8[%c0_65, %c24_66, %c0_67] : memref<1x64x256xf32, #tpu.memory_space<vmem>>, vector<1x8x256xf32>
    tpu.vector_store %arg8[%c0_65, %c24_66, %c0_67], %163 {strides = array<i32>} : memref<1x64x256xf32, #tpu.memory_space<vmem>>, vector<1x8x256xf32>,
    %165 = vector.extract_strided_slice %2 {offsets = [32, 0], sizes = [8, 1], strides = [1, 1]} : vector<64x1xf32> to vector<8x1xf32>
    %166 = vector.extract_strided_slice %3 {offsets = [32, 0], sizes = [8, 1], strides = [1, 1]} : vector<64x1xf32> to vector<8x1xf32>
    %167 = vector.shape_cast %96 : vector<1x256xf32> to vector<1x1x256xf32>
    %168 = vector.shape_cast %165 : vector<8x1xf32> to vector<1x8x1xf32>
    %169 = vector.broadcast %167 : vector<1x1x256xf32> to vector<1x8x256xf32>
    %170 = vector.broadcast %168 : vector<1x8x1xf32> to vector<1x8x256xf32>
    %171 = arith.mulf %169, %170 : vector<1x8x256xf32>
    %172 = vector.shape_cast %166 : vector<8x1xf32> to vector<1x8x1xf32>
    %173 = vector.broadcast %172 : vector<1x8x1xf32> to vector<1x8x256xf32>
    %174 = arith.addf %171, %173 : vector<1x8x256xf32>
    %cst_68 = arith.constant 0.000000e+00 : f32
    %175 = vector.broadcast %cst_68 : f32 to vector<1x8x256xf32>
    %176 = arith.subf %175, %174 : vector<1x8x256xf32>
    %177 = math.exp %176 : vector<1x8x256xf32>
    %cst_69 = arith.constant 1.000000e+00 : f32
    %178 = vector.broadcast %cst_69 : f32 to vector<1x8x256xf32>
    %179 = arith.addf %178, %177 : vector<1x8x256xf32>
    %180 = tpu.reciprocal %179 {approx = true} : vector<1x8x256xf32> -> vector<1x8x256xf32>
    %c0_70 = arith.constant 0 : index
    %c32_71 = arith.constant 32 : index
    %c0_72 = arith.constant 0 : index
    %181 = vector.load %arg8[%c0_70, %c32_71, %c0_72] : memref<1x64x256xf32, #tpu.memory_space<vmem>>, vector<1x8x256xf32>
    tpu.vector_store %arg8[%c0_70, %c32_71, %c0_72], %180 {strides = array<i32>} : memref<1x64x256xf32, #tpu.memory_space<vmem>>, vector<1x8x256xf32>,
    %182 = vector.extract_strided_slice %2 {offsets = [40, 0], sizes = [8, 1], strides = [1, 1]} : vector<64x1xf32> to vector<8x1xf32>
    %183 = vector.extract_strided_slice %3 {offsets = [40, 0], sizes = [8, 1], strides = [1, 1]} : vector<64x1xf32> to vector<8x1xf32>
    %184 = vector.shape_cast %96 : vector<1x256xf32> to vector<1x1x256xf32>
    %185 = vector.shape_cast %182 : vector<8x1xf32> to vector<1x8x1xf32>
    %186 = vector.broadcast %184 : vector<1x1x256xf32> to vector<1x8x256xf32>
    %187 = vector.broadcast %185 : vector<1x8x1xf32> to vector<1x8x256xf32>
    %188 = arith.mulf %186, %187 : vector<1x8x256xf32>
    %189 = vector.shape_cast %183 : vector<8x1xf32> to vector<1x8x1xf32>
    %190 = vector.broadcast %189 : vector<1x8x1xf32> to vector<1x8x256xf32>
    %191 = arith.addf %188, %190 : vector<1x8x256xf32>
    %cst_73 = arith.constant 0.000000e+00 : f32
    %192 = vector.broadcast %cst_73 : f32 to vector<1x8x256xf32>
    %193 = arith.subf %192, %191 : vector<1x8x256xf32>
    %194 = math.exp %193 : vector<1x8x256xf32>
    %cst_74 = arith.constant 1.000000e+00 : f32
    %195 = vector.broadcast %cst_74 : f32 to vector<1x8x256xf32>
    %196 = arith.addf %195, %194 : vector<1x8x256xf32>
    %197 = tpu.reciprocal %196 {approx = true} : vector<1x8x256xf32> -> vector<1x8x256xf32>
    %c0_75 = arith.constant 0 : index
    %c40_76 = arith.constant 40 : index
    %c0_77 = arith.constant 0 : index
    %198 = vector.load %arg8[%c0_75, %c40_76, %c0_77] : memref<1x64x256xf32, #tpu.memory_space<vmem>>, vector<1x8x256xf32>
    tpu.vector_store %arg8[%c0_75, %c40_76, %c0_77], %197 {strides = array<i32>} : memref<1x64x256xf32, #tpu.memory_space<vmem>>, vector<1x8x256xf32>,
    %199 = vector.extract_strided_slice %2 {offsets = [48, 0], sizes = [8, 1], strides = [1, 1]} : vector<64x1xf32> to vector<8x1xf32>
    %200 = vector.extract_strided_slice %3 {offsets = [48, 0], sizes = [8, 1], strides = [1, 1]} : vector<64x1xf32> to vector<8x1xf32>
    %201 = vector.shape_cast %96 : vector<1x256xf32> to vector<1x1x256xf32>
    %202 = vector.shape_cast %199 : vector<8x1xf32> to vector<1x8x1xf32>
    %203 = vector.broadcast %201 : vector<1x1x256xf32> to vector<1x8x256xf32>
    %204 = vector.broadcast %202 : vector<1x8x1xf32> to vector<1x8x256xf32>
    %205 = arith.mulf %203, %204 : vector<1x8x256xf32>
    %206 = vector.shape_cast %200 : vector<8x1xf32> to vector<1x8x1xf32>
    %207 = vector.broadcast %206 : vector<1x8x1xf32> to vector<1x8x256xf32>
    %208 = arith.addf %205, %207 : vector<1x8x256xf32>
    %cst_78 = arith.constant 0.000000e+00 : f32
    %209 = vector.broadcast %cst_78 : f32 to vector<1x8x256xf32>
    %210 = arith.subf %209, %208 : vector<1x8x256xf32>
    %211 = math.exp %210 : vector<1x8x256xf32>
    %cst_79 = arith.constant 1.000000e+00 : f32
    %212 = vector.broadcast %cst_79 : f32 to vector<1x8x256xf32>
    %213 = arith.addf %212, %211 : vector<1x8x256xf32>
    %214 = tpu.reciprocal %213 {approx = true} : vector<1x8x256xf32> -> vector<1x8x256xf32>
    %c0_80 = arith.constant 0 : index
    %c48_81 = arith.constant 48 : index
    %c0_82 = arith.constant 0 : index
    %215 = vector.load %arg8[%c0_80, %c48_81, %c0_82] : memref<1x64x256xf32, #tpu.memory_space<vmem>>, vector<1x8x256xf32>
    tpu.vector_store %arg8[%c0_80, %c48_81, %c0_82], %214 {strides = array<i32>} : memref<1x64x256xf32, #tpu.memory_space<vmem>>, vector<1x8x256xf32>,
    %216 = vector.extract_strided_slice %2 {offsets = [56, 0], sizes = [8, 1], strides = [1, 1]} : vector<64x1xf32> to vector<8x1xf32>
    %217 = vector.extract_strided_slice %3 {offsets = [56, 0], sizes = [8, 1], strides = [1, 1]} : vector<64x1xf32> to vector<8x1xf32>
    %218 = vector.shape_cast %96 : vector<1x256xf32> to vector<1x1x256xf32>
    %219 = vector.shape_cast %216 : vector<8x1xf32> to vector<1x8x1xf32>
    %220 = vector.broadcast %218 : vector<1x1x256xf32> to vector<1x8x256xf32>
    %221 = vector.broadcast %219 : vector<1x8x1xf32> to vector<1x8x256xf32>
    %222 = arith.mulf %220, %221 : vector<1x8x256xf32>
    %223 = vector.shape_cast %217 : vector<8x1xf32> to vector<1x8x1xf32>
    %224 = vector.broadcast %223 : vector<1x8x1xf32> to vector<1x8x256xf32>
    %225 = arith.addf %222, %224 : vector<1x8x256xf32>
    %cst_83 = arith.constant 0.000000e+00 : f32
    %226 = vector.broadcast %cst_83 : f32 to vector<1x8x256xf32>
    %227 = arith.subf %226, %225 : vector<1x8x256xf32>
    %228 = math.exp %227 : vector<1x8x256xf32>
    %cst_84 = arith.constant 1.000000e+00 : f32
    %229 = vector.broadcast %cst_84 : f32 to vector<1x8x256xf32>
    %230 = arith.addf %229, %228 : vector<1x8x256xf32>
    %231 = tpu.reciprocal %230 {approx = true} : vector<1x8x256xf32> -> vector<1x8x256xf32>
    %c0_85 = arith.constant 0 : index
    %c56_86 = arith.constant 56 : index
    %c0_87 = arith.constant 0 : index
    %232 = vector.load %arg8[%c0_85, %c56_86, %c0_87] : memref<1x64x256xf32, #tpu.memory_space<vmem>>, vector<1x8x256xf32>
    tpu.vector_store %arg8[%c0_85, %c56_86, %c0_87], %231 {strides = array<i32>} : memref<1x64x256xf32, #tpu.memory_space<vmem>>, vector<1x8x256xf32>,
    return
  }
  func.func @transform_0(%arg0: i32) -> (i32, i32, i32) {
    %c0_i32 = arith.constant 0 : i32
    %c0_i32_0 = arith.constant 0 : i32
    %c0_i32_1 = arith.constant 0 : i32
    return %arg0, %c0_i32, %c0_i32_0 : i32, i32, i32
  }
  func.func @transform_1(%arg0: i32) -> (i32, i32) {
    %c0_i32 = arith.constant 0 : i32
    %c0_i32_0 = arith.constant 0 : i32
    %c0_i32_1 = arith.constant 0 : i32
    return %c0_i32, %c0_i32_0 : i32, i32
  }
  func.func @transform_2(%arg0: i32) -> (i32, i32) {
    %c0_i32 = arith.constant 0 : i32
    %c0_i32_0 = arith.constant 0 : i32
    %c0_i32_1 = arith.constant 0 : i32
    return %c0_i32, %c0_i32_0 : i32, i32
  }
  func.func @transform_3(%arg0: i32) -> (i32, i32) {
    %c0_i32 = arith.constant 0 : i32
    %c0_i32_0 = arith.constant 0 : i32
    %c0_i32_1 = arith.constant 0 : i32
    return %c0_i32, %c0_i32_0 : i32, i32
  }
  func.func @transform_4(%arg0: i32) -> (i32, i32) {
    %c0_i32 = arith.constant 0 : i32
    %c0_i32_0 = arith.constant 0 : i32
    %c0_i32_1 = arith.constant 0 : i32
    return %c0_i32, %c0_i32_0 : i32, i32
  }
  func.func @transform_5(%arg0: i32) -> (i32, i32) {
    %c0_i32 = arith.constant 0 : i32
    %c0_i32_0 = arith.constant 0 : i32
    %c0_i32_1 = arith.constant 0 : i32
    return %c0_i32, %c0_i32_0 : i32, i32
  }
  func.func @transform_6(%arg0: i32) -> (i32, i32) {
    %c0_i32 = arith.constant 0 : i32
    %c0_i32_0 = arith.constant 0 : i32
    %c0_i32_1 = arith.constant 0 : i32
    return %c0_i32, %c0_i32_0 : i32, i32
  }
  func.func @transform_7(%arg0: i32) -> (i32, i32, i32) {
    %c0_i32 = arith.constant 0 : i32
    %c0_i32_0 = arith.constant 0 : i32
    %c0_i32_1 = arith.constant 0 : i32
    return %arg0, %c0_i32, %c0_i32_0 : i32, i32, i32
  }
  func.func @transform_8(%arg0: i32) -> (i32, i32, i32) {
    %c0_i32 = arith.constant 0 : i32
    %c0_i32_0 = arith.constant 0 : i32
    %c0_i32_1 = arith.constant 0 : i32
    return %arg0, %c0_i32, %c0_i32_0 : i32, i32, i32
  }
}

</mosaic_0001>

<llo_original>
// kernel: vae_forward.1
$region0: #{vae_forward.1}
  #allocation0 [shape = 'u32[]', space=smem, size = 0x4, offset = 0x4, fixed_abs, tag = 'smem constant byte address 0x4 - core index']
  #allocation1 [shape = 'u32[144,128]{1,0:T(1,128)}', space=vmem, size = 0x12000, scoped, tag = 'internal scratch']
  %s0 = inlined_call_operand.vmem [shape: f32[2,64,256], index: 0, kind: input, shape index: {}]
  %s1 = inlined_call_operand.hbm [shape: f32[64,128], index: 1, kind: input, shape index: {}]
  %s2 = inlined_call_operand.hbm [shape: f32[5,256], index: 2, kind: input, shape index: {}]
  %s3 = inlined_call_operand.vmem [shape: f32[256,128], index: 3, kind: input, shape index: {}]
  %s4 = inlined_call_operand.vmem [shape: f32[128,128], index: 4, kind: input, shape index: {}]
  %s5 = inlined_call_operand.vmem [shape: f32[128,128], index: 5, kind: input, shape index: {}]
  %s6 = inlined_call_operand.vmem [shape: f32[128,256], index: 6, kind: input, shape index: {}]
  %s7 = inlined_call_operand.vmem [shape: f32[2,64,256], index: 7, kind: output, shape index: {0}]
  %s8 = inlined_call_operand.vmem [shape: f32[2,1,128], index: 8, kind: output, shape index: {1}]
  %9 = xla_tuple %s7, %s8
  %s10 = sld [smem:[#allocation0]]
  $region77: #{vae_forward.1} parent=0
    _
  %s12 = ssub.s32 1, %s10
  %s13 = scalar_select 0, %s12, %s10
  $region1: #{vae_forward.1} parent=0
    #allocation2 [shape = 'u8[32768]{0}', space=vmem, size = 0x8000, scoped, tag = 'input window, operand 1, single buffered']
    #allocation3 [shape = 's32[2]{0}', space=sflag, size = 0x8, scoped, tag = 'scoped memory for vae_forward.1']
    #allocation4 [shape = 'u8[8192]{0}', space=vmem, size = 0x2000, scoped, tag = 'input window, operand 2, single buffered']
    #allocation5 [shape = 's32[1]{0}', space=sflag, size = 0x4, scoped, tag = 'scoped memory for vae_forward.1']
    %14 = vsyncpa [#allocation3], 0
    %15 = vsyncpa [#allocation5], 0
    loop: start=0, step=1, limit=4
    $region2: #{vae_forward.1} parent=1 // loop_pre_header
      _
    $region3: #{vae_forward.1} parent=1 // loop_header
      %s17 = sphi 0, %s21
      %p18 = scmp.ge.s32.totalorder %s17, 4
      %s27 = sphi 0, %s29
      %s30 = sphi 0, %s27
      %s31 = sphi 0, %s30
      %s47 = sphi 0, %s31
      %s51 = sphi 0, %s51
      %s53 = sphi 0, %s51
      %s54 = sphi 0, %s53
      %s68 = sphi 0, %s54
      %s72 = sphi 0, %s72
      %s74 = sphi 0, %s72
      %s75 = sphi 0, %s74
      %s89 = sphi 0, %s75
      %s93 = sphi 0, %s93
      %s95 = sphi 0, %s93
      %s96 = sphi 0, %s95
      %s110 = sphi 0, %s96
      %s114 = sphi 0, %s114
      %s116 = sphi 0, %s114
      %s117 = sphi 0, %s116
      %s131 = sphi 0, %s117
      %s135 = sphi 0, %s135
      %s137 = sphi 0, %s135
      %s138 = sphi 0, %s137
      %s152 = sphi 0, %s138
      %s156 = sphi 0, %s156
      %s158 = sphi 0, %s156
      %s159 = sphi 0, %s158
      %s173 = sphi 0, %s159
      %s179 = sphi 0, %s181
      %s182 = sphi 0, %s179
      %s183 = sphi 0, %s182
      %s199 = sphi 0, %s183
      %s205 = sphi 0, %s207
      %s208 = sphi 0, %s205
      %s209 = sphi 0, %s208
      %s225 = sphi 0, %s209
    $region4: #{vae_forward.1} parent=1 // loop_header_branch
      %20 = sbr.rel (%p18) target = $region8
    $region5: #{vae_forward.1} parent=1 // loop_body
      %s22 = ssub.s32 %s17, 1
      %s23 = ssub.s32 %s17, 2
      %s24 = sadd.s32 %s17, 1
      %s25 = ssub.s32 %s17, %s24
      %p26 = scmp.eq.s32.totalorder %s25, 0
      %s28 = sadd.s32 %s27, 1
      %s29 = scalar_select %p26, %s27, %s28
      %p32 = pneg %p26
      %p33 = scmp.eq.s32.totalorder %s17, 1
      %p34 = por %p32, %p33
      %p35 = scmp.ne.s32.totalorder %s27, %s30
      %p36 = scmp.eq.s32.totalorder %s17, 0
      %p37 = por %p35, %p36
      %p38 = scmp.ne.s32.totalorder %s27, %s30
      %p39 = scmp.eq.s32.totalorder %s22, 1
      %p40 = por %p38, %p39
      %p41 = scmp.ne.s32.totalorder %s30, %s31
      %p42 = scmp.eq.s32.totalorder %s22, 0
      %p43 = por %p41, %p42
      %p44 = scmp.ne.s32.totalorder %s30, %s31
      %p45 = scmp.eq.s32.totalorder %s23, 1
      %p46 = por %p44, %p45
      %p48 = scmp.ne.s32.totalorder %s31, %s47
      %p49 = scmp.eq.s32.totalorder %s23, 0
      %p50 = por %p48, %p49
      %s52 = sadd.s32 %s51, 1
      %p55 = scmp.eq.s32.totalorder %s17, 1
      %p56 = scmp.ne.s32.totalorder %s51, %s53
      %p57 = scmp.eq.s32.totalorder %s17, 0
      %p58 = por %p56, %p57
      %p59 = scmp.ne.s32.totalorder %s51, %s53
      %p60 = scmp.eq.s32.totalorder %s22, 1
      %p61 = por %p59, %p60
      %p62 = scmp.ne.s32.totalorder %s53, %s54
      %p63 = scmp.eq.s32.totalorder %s22, 0
      %p64 = por %p62, %p63
      %p65 = scmp.ne.s32.totalorder %s53, %s54
      %p66 = scmp.eq.s32.totalorder %s23, 1
      %p67 = por %p65, %p66
      %p69 = scmp.ne.s32.totalorder %s54, %s68
      %p70 = scmp.eq.s32.totalorder %s23, 0
      %p71 = por %p69, %p70
      %s73 = sadd.s32 %s72, 1
      %p76 = scmp.eq.s32.totalorder %s17, 1
      %p77 = scmp.ne.s32.totalorder %s72, %s74
      %p78 = scmp.eq.s32.totalorder %s17, 0
      %p79 = por %p77, %p78
      %p80 = scmp.ne.s32.totalorder %s72, %s74
      %p81 = scmp.eq.s32.totalorder %s22, 1
      %p82 = por %p80, %p81
      %p83 = scmp.ne.s32.totalorder %s74, %s75
      %p84 = scmp.eq.s32.totalorder %s22, 0
      %p85 = por %p83, %p84
      %p86 = scmp.ne.s32.totalorder %s74, %s75
      %p87 = scmp.eq.s32.totalorder %s23, 1
      %p88 = por %p86, %p87
      %p90 = scmp.ne.s32.totalorder %s75, %s89
      %p91 = scmp.eq.s32.totalorder %s23, 0
      %p92 = por %p90, %p91
      %s94 = sadd.s32 %s93, 1
      %p97 = scmp.eq.s32.totalorder %s17, 1
      %p98 = scmp.ne.s32.totalorder %s93, %s95
      %p99 = scmp.eq.s32.totalorder %s17, 0
      %p100 = por %p98, %p99
      %p101 = scmp.ne.s32.totalorder %s93, %s95
      %p102 = scmp.eq.s32.totalorder %s22, 1
      %p103 = por %p101, %p102
      %p104 = scmp.ne.s32.totalorder %s95, %s96
      %p105 = scmp.eq.s32.totalorder %s22, 0
      %p106 = por %p104, %p105
      %p107 = scmp.ne.s32.totalorder %s95, %s96
      %p108 = scmp.eq.s32.totalorder %s23, 1
      %p109 = por %p107, %p108
      %p111 = scmp.ne.s32.totalorder %s96, %s110
      %p112 = scmp.eq.s32.totalorder %s23, 0
      %p113 = por %p111, %p112
      %s115 = sadd.s32 %s114, 1
      %p118 = scmp.eq.s32.totalorder %s17, 1
      %p119 = scmp.ne.s32.totalorder %s114, %s116
      %p120 = scmp.eq.s32.totalorder %s17, 0
      %p121 = por %p119, %p120
      %p122 = scmp.ne.s32.totalorder %s114, %s116
      %p123 = scmp.eq.s32.totalorder %s22, 1
      %p124 = por %p122, %p123
      %p125 = scmp.ne.s32.totalorder %s116, %s117
      %p126 = scmp.eq.s32.totalorder %s22, 0
      %p127 = por %p125, %p126
      %p128 = scmp.ne.s32.totalorder %s116, %s117
      %p129 = scmp.eq.s32.totalorder %s23, 1
      %p130 = por %p128, %p129
      %p132 = scmp.ne.s32.totalorder %s117, %s131
      %p133 = scmp.eq.s32.totalorder %s23, 0
      %p134 = por %p132, %p133
      %s136 = sadd.s32 %s135, 1
      %p139 = scmp.eq.s32.totalorder %s17, 1
      %p140 = scmp.ne.s32.totalorder %s135, %s137
      %p141 = scmp.eq.s32.totalorder %s17, 0
      %p142 = por %p140, %p141
      %p143 = scmp.ne.s32.totalorder %s135, %s137
      %p144 = scmp.eq.s32.totalorder %s22, 1
      %p145 = por %p143, %p144
      %p146 = scmp.ne.s32.totalorder %s137, %s138
      %p147 = scmp.eq.s32.totalorder %s22, 0
      %p148 = por %p146, %p147
      %p149 = scmp.ne.s32.totalorder %s137, %s138
      %p150 = scmp.eq.s32.totalorder %s23, 1
      %p151 = por %p149, %p150
      %p153 = scmp.ne.s32.totalorder %s138, %s152
      %p154 = scmp.eq.s32.totalorder %s23, 0
      %p155 = por %p153, %p154
      %s157 = sadd.s32 %s156, 1
      %p160 = scmp.eq.s32.totalorder %s17, 1
      %p161 = scmp.ne.s32.totalorder %s156, %s158
      %p162 = scmp.eq.s32.totalorder %s17, 0
      %p163 = por %p161, %p162
      %p164 = scmp.ne.s32.totalorder %s156, %s158
      %p165 = scmp.eq.s32.totalorder %s22, 1
      %p166 = por %p164, %p165
      %p167 = scmp.ne.s32.totalorder %s158, %s159
      %p168 = scmp.eq.s32.totalorder %s22, 0
      %p169 = por %p167, %p168
      %p170 = scmp.ne.s32.totalorder %s158, %s159
      %p171 = scmp.eq.s32.totalorder %s23, 1
      %p172 = por %p170, %p171
      %p174 = scmp.ne.s32.totalorder %s159, %s173
      %p175 = scmp.eq.s32.totalorder %s23, 0
      %p176 = por %p174, %p175
      %s177 = ssub.s32 %s17, %s24
      %p178 = scmp.eq.s32.totalorder %s177, 0
      %s180 = sadd.s32 %s179, 1
      %s181 = scalar_select %p178, %s179, %s180
      %p184 = pneg %p178
      %p185 = scmp.eq.s32.totalorder %s17, 1
      %p186 = por %p184, %p185
      %p187 = scmp.ne.s32.totalorder %s179, %s182
      %p188 = scmp.eq.s32.totalorder %s17, 0
      %p189 = por %p187, %p188
      %p190 = scmp.ne.s32.totalorder %s179, %s182
      %p191 = scmp.eq.s32.totalorder %s22, 1
      %p192 = por %p190, %p191
      %p193 = scmp.ne.s32.totalorder %s182, %s183
      %p194 = scmp.eq.s32.totalorder %s22, 0
      %p195 = por %p193, %p194
      %p196 = scmp.ne.s32.totalorder %s182, %s183
      %p197 = scmp.eq.s32.totalorder %s23, 1
      %p198 = por %p196, %p197
      %p200 = scmp.ne.s32.totalorder %s183, %s199
      %p201 = scmp.eq.s32.totalorder %s23, 0
      %p202 = por %p200, %p201
      %s203 = ssub.s32 %s17, %s24
      %p204 = scmp.eq.s32.totalorder %s203, 0
      %s206 = sadd.s32 %s205, 1
      %s207 = scalar_select %p204, %s205, %s206
      %p210 = pneg %p204
      %p211 = scmp.eq.s32.totalorder %s17, 1
      %p212 = por %p210, %p211
      %p213 = scmp.ne.s32.totalorder %s205, %s208
      %p214 = scmp.eq.s32.totalorder %s17, 0
      %p215 = por %p213, %p214
      %p216 = scmp.ne.s32.totalorder %s205, %s208
      %p217 = scmp.eq.s32.totalorder %s22, 1
      %p218 = por %p216, %p217
      %p219 = scmp.ne.s32.totalorder %s208, %s209
      %p220 = scmp.eq.s32.totalorder %s22, 0
      %p221 = por %p219, %p220
      %p222 = scmp.ne.s32.totalorder %s208, %s209
      %p223 = scmp.eq.s32.totalorder %s23, 1
      %p224 = por %p222, %p223
      %p226 = scmp.ne.s32.totalorder %s209, %s225
      %p227 = scmp.eq.s32.totalorder %s23, 0
      %p228 = por %p226, %p227
      %p229 = scmp.le.s32.totalorder 1, %s17
      %p230 = scmp.lt.s32.totalorder %s17, 3
      %p231 = pnand %p229, %p230
      %p232 = pneg %p231
      // Predicated region
      $region9: #{vae_forward.1} parent=5 // pred_check
        _
      $region10: #{vae_forward.1} parent=5 // pred_check_branch
        %234 = sbr.rel (%p231) target = $region12
      $region11: #{vae_forward.1} parent=5 // pred_region
        %s235 = ssub.s32 %s17, 1
        // Predicated region
        $region13: #{vae_forward.1} parent=11 // pred_check
          %p236 = pneg %p64
        $region14: #{vae_forward.1} parent=11 // pred_check_branch
          %238 = sbr.rel (%p236) target = $region16
        $region15: #{vae_forward.1} parent=11 // pred_region
          %s240 = ssub.s32 1024, 1024
          %241 = vsyncadd [#allocation3], %s240
          %s242 = sshll.u32 [#allocation2], 4
          %s243 = int_to_ptr.vmem [resolvable:$true] %s242
          %248 = dma.hbm_to_vmem [thread:$0]  %s1, 1024, %s243, [#allocation3], 128, 128, 8
        $region16: #{vae_forward.1} parent=11 // pred_fallthru
          _
        // Predicated region
        $region17: #{vae_forward.1} parent=11 // pred_check
          %p249 = pneg %p85
        $region18: #{vae_forward.1} parent=11 // pred_check_branch
          %251 = sbr.rel (%p249) target = $region20
        $region19: #{vae_forward.1} parent=11 // pred_region
          %s253 = ssub.s32 256, 256
          %254 = vsyncadd [#allocation5], %s253
          %s256 = sshll.u32 [#allocation4], 4
          %s257 = int_to_ptr.vmem [resolvable:$true] %s256
          %259 = dma.hbm_to_vmem [thread:$0]  %s2, 256, %s257, [#allocation5]
        $region20: #{vae_forward.1} parent=11 // pred_fallthru
          _
        // Predicated region
        $region21: #{vae_forward.1} parent=11 // pred_check
          %p260 = pneg %p106
        $region22: #{vae_forward.1} parent=11 // pred_check_branch
          %262 = sbr.rel (%p260) target = $region24
        $region23: #{vae_forward.1} parent=11 // pred_region
          _
        $region24: #{vae_forward.1} parent=11 // pred_fallthru
          _
        // Predicated region
        $region25: #{vae_forward.1} parent=11 // pred_check
          %p263 = pneg %p127
        $region26: #{vae_forward.1} parent=11 // pred_check_branch
          %265 = sbr.rel (%p263) target = $region28
        $region27: #{vae_forward.1} parent=11 // pred_region
          _
        $region28: #{vae_forward.1} parent=11 // pred_fallthru
          _
        // Predicated region
        $region29: #{vae_forward.1} parent=11 // pred_check
          %p266 = pneg %p148
        $region30: #{vae_forward.1} parent=11 // pred_check_branch
          %268 = sbr.rel (%p266) target = $region32
        $region31: #{vae_forward.1} parent=11 // pred_region
          _
        $region32: #{vae_forward.1} parent=11 // pred_fallthru
          _
        // Predicated region
        $region33: #{vae_forward.1} parent=11 // pred_check
          %p269 = pneg %p169
        $region34: #{vae_forward.1} parent=11 // pred_check_branch
          %271 = sbr.rel (%p269) target = $region36
        $region35: #{vae_forward.1} parent=11 // pred_region
          _
        $region36: #{vae_forward.1} parent=11 // pred_fallthru
          _
      $region12: #{vae_forward.1} parent=5 // pred_fallthru
        _
      %p272 = scmp.lt.s32.totalorder %s17, 2
      // Predicated region
      $region37: #{vae_forward.1} parent=5 // pred_check
        %p273 = pneg %p272
      $region38: #{vae_forward.1} parent=5 // pred_check_branch
        %275 = sbr.rel (%p273) target = $region40
      $region39: #{vae_forward.1} parent=5 // pred_region
        // Predicated region
        $region41: #{vae_forward.1} parent=39 // pred_check
          %p276 = pneg %p37
        $region42: #{vae_forward.1} parent=39 // pred_check_branch
          %278 = sbr.rel (%p276) target = $region44
        $region43: #{vae_forward.1} parent=39 // pred_region
          %p279 = scmp.lt.s32.totalorder %s17, 1
          %s280 = scalar_select %p279, %s17, 1
          %s281 = smul.addr %s280, 16
          %s282 = smul.addr %s281, 8
          %s283 = scalar_lea.vmem %s0, %s282
        $region44: #{vae_forward.1} parent=39 // pred_fallthru
          _
      $region40: #{vae_forward.1} parent=5 // pred_fallthru
        _
      %p284 = scmp.le.s32.totalorder 1, %s17
      %p285 = scmp.lt.s32.totalorder %s17, 3
      %p286 = pnand %p284, %p285
      %p287 = pneg %p286
      // Predicated region
      $region45: #{vae_forward.1} parent=5 // pred_check
        _
      $region46: #{vae_forward.1} parent=5 // pred_check_branch
        %289 = sbr.rel (%p286) target = $region48
      $region47: #{vae_forward.1} parent=5 // pred_region
        %s290 = ssub.s32 %s17, 1
        // Predicated region
        $region49: #{vae_forward.1} parent=47 // pred_check
          %p291 = pneg %p64
        $region50: #{vae_forward.1} parent=47 // pred_check_branch
          %293 = sbr.rel (%p291) target = $region52
        $region51: #{vae_forward.1} parent=47 // pred_region
          %294 = dma.done [#allocation3], 1024
        $region52: #{vae_forward.1} parent=47 // pred_fallthru
          _
        // Predicated region
        $region53: #{vae_forward.1} parent=47 // pred_check
          %p295 = pneg %p85
        $region54: #{vae_forward.1} parent=47 // pred_check_branch
          %297 = sbr.rel (%p295) target = $region56
        $region55: #{vae_forward.1} parent=47 // pred_region
          %298 = dma.done [#allocation5], 256
        $region56: #{vae_forward.1} parent=47 // pred_fallthru
          _
        %p299 = scmp.lt.s32.totalorder %s22, 1
        %s300 = scalar_select %p299, %s22, 1
        %s301 = smul.addr %s300, 16
        %s302 = smul.addr %s301, 8
        %s303 = scalar_lea.vmem %s0, %s302
        %p304 = pneg %p43
        %p305 = pneg %p40
        %p306 = pneg %p64
        %p307 = pneg %p61
        %p308 = pneg %p85
        %p309 = pneg %p82
        %p310 = pneg %p106
        %p311 = pneg %p103
        %p312 = pneg %p127
        %p313 = pneg %p124
        %p314 = pneg %p148
        %p315 = pneg %p145
        %p316 = pneg %p169
        %p317 = pneg %p166
        %p318 = pneg %p195
        %p319 = pneg %p192
        %p320 = scmp.lt.s32.totalorder %s22, 1
        %s321 = scalar_select %p320, %s22, 1
        %s322 = smul.addr %s321, 16
        %s323 = smul.addr %s322, 8
        %s324 = scalar_lea.vmem %s7, %s323
        %p325 = pneg %p221
        %p326 = pneg %p218
        %p327 = scmp.lt.s32.totalorder %s22, 1
        %s328 = scalar_select %p327, %s22, 1
        %s329 = scalar_lea.vmem %s8, %s328
        %p330 = scmp.lt.s32.totalorder %s22, 1
        %s331 = scalar_select %p330, %s22, 1
        %s332 = smul.addr %s331, 16
        %s333 = smul.addr %s332, 8
        %s334 = scalar_lea.vmem %s0, %s333
        %p335 = scmp.lt.s32.totalorder %s22, 1
        %s336 = scalar_select %p335, %s22, 1
        %s337 = smul.addr %s336, 16
        %s338 = smul.addr %s337, 8
        %s339 = scalar_lea.vmem %s7, %s338
        %p340 = scmp.lt.s32.totalorder %s22, 1
        %s341 = scalar_select %p340, %s22, 1
        %s342 = scalar_lea.vmem %s8, %s341
        %v343 = vld [vmem:[#allocation2] sm:$0xff]
        %v344 = vld [vmem:[#allocation2 + $0x8] sm:$0xff]
        %v345 = vld [vmem:[#allocation2 + $0x10] sm:$0xff]
        %v346 = vld [vmem:[#allocation2 + $0x18] sm:$0xff]
        %v347 = vld [vmem:[#allocation2 + $0x20] sm:$0xff]
        %v348 = vld [vmem:[#allocation2 + $0x28] sm:$0xff]
        %v349 = vld [vmem:[#allocation2 + $0x30] sm:$0xff]
        %v350 = vld [vmem:[#allocation2 + $0x38] sm:$0xff]
        %v351 = vld [vmem:[#allocation4] sm:$0x1f]
        %v352 = vld [vmem:[#allocation4 + $0x8] sm:$0x1f]
        %v353 = vld [vmem:[%s334] sm:$0xff]
        %v354 = vld [vmem:[%s334 + $0x8] sm:$0xff]
        %356 = vset.pattern.permute.xlu0 0
        %357 = vperm.xlu0 %356, %v343
        %v358 = vpop.permute.xlu0 %357
        %v360 = vmul.f32 %v353, %v358
        %v361 = vmul.f32 %v354, %v358
        %v362 = vrot.slane %v360, 4
        %v363 = vadd.f32 %v360, %v362
        %v364 = vrot.slane %v363, 2
        %v365 = vadd.f32 %v363, %v364
        %v366 = vrot.slane %v365, 1
        %v367 = vadd.f32 %v365, %v366
        %v368 = vrot.slane %v361, 4
        %v369 = vadd.f32 %v361, %v368
        %v370 = vrot.slane %v369, 2
        %v371 = vadd.f32 %v369, %v370
        %v372 = vrot.slane %v371, 1
        %v373 = vadd.f32 %v371, %v372
        %v374 = vadd.f32 %v367, 0.0
        %v375 = vadd.f32 %v373, 0.0
        %v376 = vld [vmem:[%s334 + $0x10] sm:$0xff]
        %v377 = vld [vmem:[%s334 + $0x18] sm:$0xff]
        %379 = vset.pattern.permute.xlu0 0
        %380 = vperm.xlu0 %379, %v344
        %v381 = vpop.permute.xlu0 %380
        %v383 = vmul.f32 %v376, %v381
        %v384 = vmul.f32 %v377, %v381
        %v385 = vrot.slane %v383, 4
        %v386 = vadd.f32 %v383, %v385
        %v387 = vrot.slane %v386, 2
        %v388 = vadd.f32 %v386, %v387
        %v389 = vrot.slane %v388, 1
        %v390 = vadd.f32 %v388, %v389
        %v391 = vrot.slane %v384, 4
        %v392 = vadd.f32 %v384, %v391
        %v393 = vrot.slane %v392, 2
        %v394 = vadd.f32 %v392, %v393
        %v395 = vrot.slane %v394, 1
        %v396 = vadd.f32 %v394, %v395
        %v397 = vadd.f32 %v374, %v390
        %v398 = vadd.f32 %v375, %v396
        %v399 = vld [vmem:[%s334 + $0x20] sm:$0xff]
        %v400 = vld [vmem:[%s334 + $0x28] sm:$0xff]
        %402 = vset.pattern.permute.xlu0 0
        %403 = vperm.xlu0 %402, %v345
        %v404 = vpop.permute.xlu0 %403
        %v406 = vmul.f32 %v399, %v404
        %v407 = vmul.f32 %v400, %v404
        %v408 = vrot.slane %v406, 4
        %v409 = vadd.f32 %v406, %v408
        %v410 = vrot.slane %v409, 2
        %v411 = vadd.f32 %v409, %v410
        %v412 = vrot.slane %v411, 1
        %v413 = vadd.f32 %v411, %v412
        %v414 = vrot.slane %v407, 4
        %v415 = vadd.f32 %v407, %v414
        %v416 = vrot.slane %v415, 2
        %v417 = vadd.f32 %v415, %v416
        %v418 = vrot.slane %v417, 1
        %v419 = vadd.f32 %v417, %v418
        %v420 = vadd.f32 %v397, %v413
        %v421 = vadd.f32 %v398, %v419
        %v422 = vld [vmem:[%s334 + $0x30] sm:$0xff]
        %v423 = vld [vmem:[%s334 + $0x38] sm:$0xff]
        %425 = vset.pattern.permute.xlu0 0
        %426 = vperm.xlu0 %425, %v346
        %v427 = vpop.permute.xlu0 %426
        %v429 = vmul.f32 %v422, %v427
        %v430 = vmul.f32 %v423, %v427
        %v431 = vrot.slane %v429, 4
        %v432 = vadd.f32 %v429, %v431
        %v433 = vrot.slane %v432, 2
        %v434 = vadd.f32 %v432, %v433
        %v435 = vrot.slane %v434, 1
        %v436 = vadd.f32 %v434, %v435
        %v437 = vrot.slane %v430, 4
        %v438 = vadd.f32 %v430, %v437
        %v439 = vrot.slane %v438, 2
        %v440 = vadd.f32 %v438, %v439
        %v441 = vrot.slane %v440, 1
        %v442 = vadd.f32 %v440, %v441
        %v443 = vadd.f32 %v420, %v436
        %v444 = vadd.f32 %v421, %v442
        %v445 = vld [vmem:[%s334 + $0x40] sm:$0xff]
        %v446 = vld [vmem:[%s334 + $0x48] sm:$0xff]
        %448 = vset.pattern.permute.xlu0 0
        %449 = vperm.xlu0 %448, %v347
        %v450 = vpop.permute.xlu0 %449
        %v452 = vmul.f32 %v445, %v450
        %v453 = vmul.f32 %v446, %v450
        %v454 = vrot.slane %v452, 4
        %v455 = vadd.f32 %v452, %v454
        %v456 = vrot.slane %v455, 2
        %v457 = vadd.f32 %v455, %v456
        %v458 = vrot.slane %v457, 1
        %v459 = vadd.f32 %v457, %v458
        %v460 = vrot.slane %v453, 4
        %v461 = vadd.f32 %v453, %v460
        %v462 = vrot.slane %v461, 2
        %v463 = vadd.f32 %v461, %v462
        %v464 = vrot.slane %v463, 1
        %v465 = vadd.f32 %v463, %v464
        %v466 = vadd.f32 %v443, %v459
        %v467 = vadd.f32 %v444, %v465
        %v468 = vld [vmem:[%s334 + $0x50] sm:$0xff]
        %v469 = vld [vmem:[%s334 + $0x58] sm:$0xff]
        %471 = vset.pattern.permute.xlu0 0
        %472 = vperm.xlu0 %471, %v348
        %v473 = vpop.permute.xlu0 %472
        %v475 = vmul.f32 %v468, %v473
        %v476 = vmul.f32 %v469, %v473
        %v477 = vrot.slane %v475, 4
        %v478 = vadd.f32 %v475, %v477
        %v479 = vrot.slane %v478, 2
        %v480 = vadd.f32 %v478, %v479
        %v481 = vrot.slane %v480, 1
        %v482 = vadd.f32 %v480, %v481
        %v483 = vrot.slane %v476, 4
        %v484 = vadd.f32 %v476, %v483
        %v485 = vrot.slane %v484, 2
        %v486 = vadd.f32 %v484, %v485
        %v487 = vrot.slane %v486, 1
        %v488 = vadd.f32 %v486, %v487
        %v489 = vadd.f32 %v466, %v482
        %v490 = vadd.f32 %v467, %v488
        %v491 = vld [vmem:[%s334 + $0x60] sm:$0xff]
        %v492 = vld [vmem:[%s334 + $0x68] sm:$0xff]
        %494 = vset.pattern.permute.xlu0 0
        %495 = vperm.xlu0 %494, %v349
        %v496 = vpop.permute.xlu0 %495
        %v498 = vmul.f32 %v491, %v496
        %v499 = vmul.f32 %v492, %v496
        %v500 = vrot.slane %v498, 4
        %v501 = vadd.f32 %v498, %v500
        %v502 = vrot.slane %v501, 2
        %v503 = vadd.f32 %v501, %v502
        %v504 = vrot.slane %v503, 1
        %v505 = vadd.f32 %v503, %v504
        %v506 = vrot.slane %v499, 4
        %v507 = vadd.f32 %v499, %v506
        %v508 = vrot.slane %v507, 2
        %v509 = vadd.f32 %v507, %v508
        %v510 = vrot.slane %v509, 1
        %v511 = vadd.f32 %v509, %v510
        %v512 = vadd.f32 %v489, %v505
        %v513 = vadd.f32 %v490, %v511
        %v514 = vld [vmem:[%s334 + $0x70] sm:$0xff]
        %v515 = vld [vmem:[%s334 + $0x78] sm:$0xff]
        %517 = vset.pattern.permute.xlu0 0
        %518 = vperm.xlu0 %517, %v350
        %v519 = vpop.permute.xlu0 %518
        %v521 = vmul.f32 %v514, %v519
        %v522 = vmul.f32 %v515, %v519
        %v523 = vrot.slane %v521, 4
        %v524 = vadd.f32 %v521, %v523
        %v525 = vrot.slane %v524, 2
        %v526 = vadd.f32 %v524, %v525
        %v527 = vrot.slane %v526, 1
        %v528 = vadd.f32 %v526, %v527
        %v529 = vrot.slane %v522, 4
        %v530 = vadd.f32 %v522, %v529
        %v531 = vrot.slane %v530, 2
        %v532 = vadd.f32 %v530, %v531
        %v533 = vrot.slane %v532, 1
        %v534 = vadd.f32 %v532, %v533
        %v535 = vadd.f32 %v512, %v528
        %v536 = vadd.f32 %v513, %v534
        %538 = vset.pattern.permute.xlu0 0
        %539 = vperm.xlu0 %538, %v351
        %v540 = vpop.permute.xlu0 %539
        %v542 = vadd.f32 %v535, %v540
        %v543 = vadd.f32 %v536, %v540
        %v544 = vmax.f32 %v542, 0.0
        %v545 = vmax.f32 %v543, 0.0
        %v546 = vld [vmem:[%s3] sm:$0xff]
        %v547 = vld [vmem:[%s3 + $0x8] sm:$0xff]
        %v548 = vld [vmem:[%s3 + $0x10] sm:$0xff]
        %v549 = vld [vmem:[%s3 + $0x18] sm:$0xff]
        %v550 = vld [vmem:[%s3 + $0x20] sm:$0xff]
        %v551 = vld [vmem:[%s3 + $0x28] sm:$0xff]
        %v552 = vld [vmem:[%s3 + $0x30] sm:$0xff]
        %v553 = vld [vmem:[%s3 + $0x38] sm:$0xff]
        %v554 = vld [vmem:[%s3 + $0x40] sm:$0xff]
        %v555 = vld [vmem:[%s3 + $0x48] sm:$0xff]
        %v556 = vld [vmem:[%s3 + $0x50] sm:$0xff]
        %v557 = vld [vmem:[%s3 + $0x58] sm:$0xff]
        %v558 = vld [vmem:[%s3 + $0x60] sm:$0xff]
        %v559 = vld [vmem:[%s3 + $0x68] sm:$0xff]
        %v560 = vld [vmem:[%s3 + $0x70] sm:$0xff]
        %v561 = vld [vmem:[%s3 + $0x78] sm:$0xff]
        %v562 = vld [vmem:[%s3 + $0x80] sm:$0xff]
        %v563 = vld [vmem:[%s3 + $0x88] sm:$0xff]
        %v564 = vld [vmem:[%s3 + $0x90] sm:$0xff]
        %v565 = vld [vmem:[%s3 + $0x98] sm:$0xff]
        %v566 = vld [vmem:[%s3 + $0xa0] sm:$0xff]
        %v567 = vld [vmem:[%s3 + $0xa8] sm:$0xff]
        %v568 = vld [vmem:[%s3 + $0xb0] sm:$0xff]
        %v569 = vld [vmem:[%s3 + $0xb8] sm:$0xff]
        %v570 = vld [vmem:[%s3 + $0xc0] sm:$0xff]
        %v571 = vld [vmem:[%s3 + $0xc8] sm:$0xff]
        %v572 = vld [vmem:[%s3 + $0xd0] sm:$0xff]
        %v573 = vld [vmem:[%s3 + $0xd8] sm:$0xff]
        %v574 = vld [vmem:[%s3 + $0xe0] sm:$0xff]
        %v575 = vld [vmem:[%s3 + $0xe8] sm:$0xff]
        %v576 = vld [vmem:[%s3 + $0xf0] sm:$0xff]
        %v577 = vld [vmem:[%s3 + $0xf8] sm:$0xff]
        %v580 = vrot.slane %v544, 4
        %v581 = vrot.slane %v545, 4
        %584 = vmatprep.subr.mxu0 0.0
        %585 = vmatpush1.msra.mxu0 %v561
        %586 = vmatprep.subr.mxu0 0.0
        %587 = vmatpush1.msra.mxu0 %v560
        %588 = vmatprep.subr.mxu0 0.0
        %589 = vmatpush1.msra.mxu0 %v559
        %590 = vmatprep.subr.mxu0 0.0
        %591 = vmatpush1.msra.mxu0 %v558
        %592 = vmatprep.subr.mxu0 0.0
        %593 = vmatpush1.msra.mxu0 %v557
        %594 = vmatprep.subr.mxu0 0.0
        %595 = vmatpush1.msra.mxu0 %v556
        %596 = vmatprep.subr.mxu0 0.0
        %597 = vmatpush1.msra.mxu0 %v555
        %598 = vmatprep.subr.mxu0 0.0
        %599 = vmatpush1.msra.mxu0 %v554
        %600 = vmatprep.subr.mxu0 0.0
        %601 = vmatpush1.msra.mxu0 %v553
        %602 = vmatprep.subr.mxu0 0.0
        %603 = vmatpush1.msra.mxu0 %v552
        %604 = vmatprep.subr.mxu0 0.0
        %605 = vmatpush1.msra.mxu0 %v551
        %606 = vmatprep.subr.mxu0 0.0
        %607 = vmatpush1.msra.mxu0 %v550
        %608 = vmatprep.subr.mxu0 0.0
        %609 = vmatpush1.msra.mxu0 %v549
        %610 = vmatprep.subr.mxu0 0.0
        %611 = vmatpush1.msra.mxu0 %v548
        %612 = vmatprep.subr.mxu0 0.0
        %613 = vmatpush1.msra.mxu0 %v547
        %614 = vmatprep.subr.mxu0 0.0
        %615 = vmatpush1.msra.mxu0 %v546
        %616 = vmatprep.subr.mxu0 0.0
        %617 = vmatpush2.msra.mxu0 %v577
        %618 = vmatprep.subr.mxu0 0.0
        %619 = vmatpush2.msra.mxu0 %v576
        %620 = vmatprep.subr.mxu0 0.0
        %621 = vmatpush2.msra.mxu0 %v575
        %622 = vmatprep.subr.mxu0 0.0
        %623 = vmatpush2.msra.mxu0 %v574
        %624 = vmatprep.subr.mxu0 0.0
        %625 = vmatpush2.msra.mxu0 %v573
        %626 = vmatprep.subr.mxu0 0.0
        %627 = vmatpush2.msra.mxu0 %v572
        %628 = vmatprep.subr.mxu0 0.0
        %629 = vmatpush2.msra.mxu0 %v571
        %630 = vmatprep.subr.mxu0 0.0
        %631 = vmatpush2.msra.mxu0 %v570
        %632 = vmatprep.subr.mxu0 0.0
        %633 = vmatpush2.msra.mxu0 %v569
        %634 = vmatprep.subr.mxu0 0.0
        %635 = vmatpush2.msra.mxu0 %v568
        %636 = vmatprep.subr.mxu0 0.0
        %637 = vmatpush2.msra.mxu0 %v567
        %638 = vmatprep.subr.mxu0 0.0
        %639 = vmatpush2.msra.mxu0 %v566
        %640 = vmatprep.subr.mxu0 0.0
        %641 = vmatpush2.msra.mxu0 %v565
        %642 = vmatprep.subr.mxu0 0.0
        %643 = vmatpush2.msra.mxu0 %v564
        %644 = vmatprep.subr.mxu0 0.0
        %645 = vmatpush2.msra.mxu0 %v563
        %646 = vmatprep.subr.mxu0 0.0
        %647 = vmatpush2.msra.mxu0 %v562
        %648 = vmatprep.mubr.f32.mxu0 %v581
        %649 = vmatmul.mubr.f32.gmra.mxu0 %v580
        %v650 = vpop.f32.mrf.mxu0
        %v651 = vadd.f32 %v351, %v650
        %v652 = vpop.f32.mrf.mxu0
        %653 = vdwg.mxu0
        %v654 = vmax.f32 %v651, 0.0
        %v655 = vld [vmem:[%s4] sm:$0xff]
        %v656 = vld [vmem:[%s4 + $0x8] sm:$0xff]
        %v657 = vld [vmem:[%s4 + $0x10] sm:$0xff]
        %v658 = vld [vmem:[%s4 + $0x18] sm:$0xff]
        %v659 = vld [vmem:[%s4 + $0x20] sm:$0xff]
        %v660 = vld [vmem:[%s4 + $0x28] sm:$0xff]
        %v661 = vld [vmem:[%s4 + $0x30] sm:$0xff]
        %v662 = vld [vmem:[%s4 + $0x38] sm:$0xff]
        %v663 = vld [vmem:[%s4 + $0x40] sm:$0xff]
        %v664 = vld [vmem:[%s4 + $0x48] sm:$0xff]
        %v665 = vld [vmem:[%s4 + $0x50] sm:$0xff]
        %v666 = vld [vmem:[%s4 + $0x58] sm:$0xff]
        %v667 = vld [vmem:[%s4 + $0x60] sm:$0xff]
        %v668 = vld [vmem:[%s4 + $0x68] sm:$0xff]
        %v669 = vld [vmem:[%s4 + $0x70] sm:$0xff]
        %v670 = vld [vmem:[%s4 + $0x78] sm:$0xff]
        %v671 = vrot.slane %v351, 1
        %673 = vmatprep.subr.mxu0 0.0
        %674 = vmatpush1.msra.mxu0 %v670
        %675 = vmatprep.subr.mxu0 0.0
        %676 = vmatpush1.msra.mxu0 %v669
        %677 = vmatprep.subr.mxu0 0.0
        %678 = vmatpush1.msra.mxu0 %v668
        %679 = vmatprep.subr.mxu0 0.0
        %680 = vmatpush1.msra.mxu0 %v667
        %681 = vmatprep.subr.mxu0 0.0
        %682 = vmatpush1.msra.mxu0 %v666
        %683 = vmatprep.subr.mxu0 0.0
        %684 = vmatpush1.msra.mxu0 %v665
        %685 = vmatprep.subr.mxu0 0.0
        %686 = vmatpush1.msra.mxu0 %v664
        %687 = vmatprep.subr.mxu0 0.0
        %688 = vmatpush1.msra.mxu0 %v663
        %689 = vmatprep.subr.mxu0 0.0
        %690 = vmatpush1.msra.mxu0 %v662
        %691 = vmatprep.subr.mxu0 0.0
        %692 = vmatpush1.msra.mxu0 %v661
        %693 = vmatprep.subr.mxu0 0.0
        %694 = vmatpush1.msra.mxu0 %v660
        %695 = vmatprep.subr.mxu0 0.0
        %696 = vmatpush1.msra.mxu0 %v659
        %697 = vmatprep.subr.mxu0 0.0
        %698 = vmatpush1.msra.mxu0 %v658
        %699 = vmatprep.subr.mxu0 0.0
        %700 = vmatpush1.msra.mxu0 %v657
        %701 = vmatprep.subr.mxu0 0.0
        %702 = vmatpush1.msra.mxu0 %v656
        %703 = vmatprep.subr.mxu0 0.0
        %704 = vmatpush1.msra.mxu0 %v655
        %705 = vmatprep.subr.mxu0 0.0
        %706 = vmatpush2.msra.mxu0 0.0
        %707 = vmatprep.subr.mxu0 0.0
        %708 = vmatpush2.msra.mxu0 0.0
        %709 = vmatprep.subr.mxu0 0.0
        %710 = vmatpush2.msra.mxu0 0.0
        %711 = vmatprep.subr.mxu0 0.0
        %712 = vmatpush2.msra.mxu0 0.0
        %713 = vmatprep.subr.mxu0 0.0
        %714 = vmatpush2.msra.mxu0 0.0
        %715 = vmatprep.subr.mxu0 0.0
        %716 = vmatpush2.msra.mxu0 0.0
        %717 = vmatprep.subr.mxu0 0.0
        %718 = vmatpush2.msra.mxu0 0.0
        %719 = vmatprep.subr.mxu0 0.0
        %720 = vmatpush2.msra.mxu0 0.0
        %721 = vmatprep.subr.mxu0 0.0
        %722 = vmatpush2.msra.mxu0 0.0
        %723 = vmatprep.subr.mxu0 0.0
        %724 = vmatpush2.msra.mxu0 0.0
        %725 = vmatprep.subr.mxu0 0.0
        %726 = vmatpush2.msra.mxu0 0.0
        %727 = vmatprep.subr.mxu0 0.0
        %728 = vmatpush2.msra.mxu0 0.0
        %729 = vmatprep.subr.mxu0 0.0
        %730 = vmatpush2.msra.mxu0 0.0
        %731 = vmatprep.subr.mxu0 0.0
        %732 = vmatpush2.msra.mxu0 0.0
        %733 = vmatprep.subr.mxu0 0.0
        %734 = vmatpush2.msra.mxu0 0.0
        %735 = vmatprep.subr.mxu0 0.0
        %736 = vmatpush2.msra.mxu0 0.0
        %737 = vmatprep.mubr.f32.mxu0 0.0
        %738 = vmatmul.mubr.f32.gmra.mxu0 %v654
        %v739 = vpop.f32.mrf.mxu0
        %v740 = vadd.f32 %v671, %v739
        %v741 = vpop.f32.mrf.mxu0
        %742 = vdwg.mxu0
        %v743 = vlaneseq
        %v744 = vand.u32 %v743, 127
        %vm745 = vcmp.ge.s32.totalorder %v744, 2
        %v746 = vmax.f32 %v740, 0.0
        %v747 = vsel %vm745, %v746, %v740
        %748 = vst [vmem:[%s342] sm:$0x1] %v747
        %v749 = vld [vmem:[%s5] sm:$0xff]
        %v750 = vld [vmem:[%s5 + $0x8] sm:$0xff]
        %v751 = vld [vmem:[%s5 + $0x10] sm:$0xff]
        %v752 = vld [vmem:[%s5 + $0x18] sm:$0xff]
        %v753 = vld [vmem:[%s5 + $0x20] sm:$0xff]
        %v754 = vld [vmem:[%s5 + $0x28] sm:$0xff]
        %v755 = vld [vmem:[%s5 + $0x30] sm:$0xff]
        %v756 = vld [vmem:[%s5 + $0x38] sm:$0xff]
        %v757 = vld [vmem:[%s5 + $0x40] sm:$0xff]
        %v758 = vld [vmem:[%s5 + $0x48] sm:$0xff]
        %v759 = vld [vmem:[%s5 + $0x50] sm:$0xff]
        %v760 = vld [vmem:[%s5 + $0x58] sm:$0xff]
        %v761 = vld [vmem:[%s5 + $0x60] sm:$0xff]
        %v762 = vld [vmem:[%s5 + $0x68] sm:$0xff]
        %v763 = vld [vmem:[%s5 + $0x70] sm:$0xff]
        %v764 = vld [vmem:[%s5 + $0x78] sm:$0xff]
        %v765 = vrot.slane %v351, 2
        %767 = vmatprep.subr.mxu0 0.0
        %768 = vmatpush1.msra.mxu0 %v764
        %769 = vmatprep.subr.mxu0 0.0
        %770 = vmatpush1.msra.mxu0 %v763
        %771 = vmatprep.subr.mxu0 0.0
        %772 = vmatpush1.msra.mxu0 %v762
        %773 = vmatprep.subr.mxu0 0.0
        %774 = vmatpush1.msra.mxu0 %v761
        %775 = vmatprep.subr.mxu0 0.0
        %776 = vmatpush1.msra.mxu0 %v760
        %777 = vmatprep.subr.mxu0 0.0
        %778 = vmatpush1.msra.mxu0 %v759
        %779 = vmatprep.subr.mxu0 0.0
        %780 = vmatpush1.msra.mxu0 %v758
        %781 = vmatprep.subr.mxu0 0.0
        %782 = vmatpush1.msra.mxu0 %v757
        %783 = vmatprep.subr.mxu0 0.0
        %784 = vmatpush1.msra.mxu0 %v756
        %785 = vmatprep.subr.mxu0 0.0
        %786 = vmatpush1.msra.mxu0 %v755
        %787 = vmatprep.subr.mxu0 0.0
        %788 = vmatpush1.msra.mxu0 %v754
        %789 = vmatprep.subr.mxu0 0.0
        %790 = vmatpush1.msra.mxu0 %v753
        %791 = vmatprep.subr.mxu0 0.0
        %792 = vmatpush1.msra.mxu0 %v752
        %793 = vmatprep.subr.mxu0 0.0
        %794 = vmatpush1.msra.mxu0 %v751
        %795 = vmatprep.subr.mxu0 0.0
        %796 = vmatpush1.msra.mxu0 %v750
        %797 = vmatprep.subr.mxu0 0.0
        %798 = vmatpush1.msra.mxu0 %v749
        %799 = vmatprep.subr.mxu0 0.0
        %800 = vmatpush2.msra.mxu0 0.0
        %801 = vmatprep.subr.mxu0 0.0
        %802 = vmatpush2.msra.mxu0 0.0
        %803 = vmatprep.subr.mxu0 0.0
        %804 = vmatpush2.msra.mxu0 0.0
        %805 = vmatprep.subr.mxu0 0.0
        %806 = vmatpush2.msra.mxu0 0.0
        %807 = vmatprep.subr.mxu0 0.0
        %808 = vmatpush2.msra.mxu0 0.0
        %809 = vmatprep.subr.mxu0 0.0
        %810 = vmatpush2.msra.mxu0 0.0
        %811 = vmatprep.subr.mxu0 0.0
        %812 = vmatpush2.msra.mxu0 0.0
        %813 = vmatprep.subr.mxu0 0.0
        %814 = vmatpush2.msra.mxu0 0.0
        %815 = vmatprep.subr.mxu0 0.0
        %816 = vmatpush2.msra.mxu0 0.0
        %817 = vmatprep.subr.mxu0 0.0
        %818 = vmatpush2.msra.mxu0 0.0
        %819 = vmatprep.subr.mxu0 0.0
        %820 = vmatpush2.msra.mxu0 0.0
        %821 = vmatprep.subr.mxu0 0.0
        %822 = vmatpush2.msra.mxu0 0.0
        %823 = vmatprep.subr.mxu0 0.0
        %824 = vmatpush2.msra.mxu0 0.0
        %825 = vmatprep.subr.mxu0 0.0
        %826 = vmatpush2.msra.mxu0 0.0
        %827 = vmatprep.subr.mxu0 0.0
        %828 = vmatpush2.msra.mxu0 0.0
        %829 = vmatprep.subr.mxu0 0.0
        %830 = vmatpush2.msra.mxu0 0.0
        %831 = vmatprep.mubr.f32.mxu0 0.0
        %832 = vmatmul.mubr.f32.gmra.mxu0 %v747
        %v833 = vpop.f32.mrf.mxu0
        %v834 = vadd.f32 %v765, %v833
        %v835 = vpop.f32.mrf.mxu0
        %836 = vdwg.mxu0
        %v837 = vmax.f32 %v834, 0.0
        %v838 = vld [vmem:[%s6] sm:$0xff]
        %v839 = vld [vmem:[%s6 + $0x8] sm:$0xff]
        %v840 = vld [vmem:[%s6 + $0x10] sm:$0xff]
        %v841 = vld [vmem:[%s6 + $0x18] sm:$0xff]
        %v842 = vld [vmem:[%s6 + $0x20] sm:$0xff]
        %v843 = vld [vmem:[%s6 + $0x28] sm:$0xff]
        %v844 = vld [vmem:[%s6 + $0x30] sm:$0xff]
        %v845 = vld [vmem:[%s6 + $0x38] sm:$0xff]
        %v846 = vld [vmem:[%s6 + $0x40] sm:$0xff]
        %v847 = vld [vmem:[%s6 + $0x48] sm:$0xff]
        %v848 = vld [vmem:[%s6 + $0x50] sm:$0xff]
        %v849 = vld [vmem:[%s6 + $0x58] sm:$0xff]
        %v850 = vld [vmem:[%s6 + $0x60] sm:$0xff]
        %v851 = vld [vmem:[%s6 + $0x68] sm:$0xff]
        %v852 = vld [vmem:[%s6 + $0x70] sm:$0xff]
        %v853 = vld [vmem:[%s6 + $0x78] sm:$0xff]
        %v854 = vld [vmem:[%s6 + $0x80] sm:$0xff]
        %v855 = vld [vmem:[%s6 + $0x88] sm:$0xff]
        %v856 = vld [vmem:[%s6 + $0x90] sm:$0xff]
        %v857 = vld [vmem:[%s6 + $0x98] sm:$0xff]
        %v858 = vld [vmem:[%s6 + $0xa0] sm:$0xff]
        %v859 = vld [vmem:[%s6 + $0xa8] sm:$0xff]
        %v860 = vld [vmem:[%s6 + $0xb0] sm:$0xff]
        %v861 = vld [vmem:[%s6 + $0xb8] sm:$0xff]
        %v862 = vld [vmem:[%s6 + $0xc0] sm:$0xff]
        %v863 = vld [vmem:[%s6 + $0xc8] sm:$0xff]
        %v864 = vld [vmem:[%s6 + $0xd0] sm:$0xff]
        %v865 = vld [vmem:[%s6 + $0xd8] sm:$0xff]
        %v866 = vld [vmem:[%s6 + $0xe0] sm:$0xff]
        %v867 = vld [vmem:[%s6 + $0xe8] sm:$0xff]
        %v868 = vld [vmem:[%s6 + $0xf0] sm:$0xff]
        %v869 = vld [vmem:[%s6 + $0xf8] sm:$0xff]
        %v871 = vrot.slane %v351, 3
        %v872 = vrot.slane %v352, 3
        %875 = vmatprep.subr.mxu0 %v869
        %876 = vmatpush1.msra.mxu0 %v868
        %877 = vmatprep.subr.mxu0 %v867
        %878 = vmatpush1.msra.mxu0 %v866
        %879 = vmatprep.subr.mxu0 %v865
        %880 = vmatpush1.msra.mxu0 %v864
        %881 = vmatprep.subr.mxu0 %v863
        %882 = vmatpush1.msra.mxu0 %v862
        %883 = vmatprep.subr.mxu0 %v861
        %884 = vmatpush1.msra.mxu0 %v860
        %885 = vmatprep.subr.mxu0 %v859
        %886 = vmatpush1.msra.mxu0 %v858
        %887 = vmatprep.subr.mxu0 %v857
        %888 = vmatpush1.msra.mxu0 %v856
        %889 = vmatprep.subr.mxu0 %v855
        %890 = vmatpush1.msra.mxu0 %v854
        %891 = vmatprep.subr.mxu0 %v853
        %892 = vmatpush1.msra.mxu0 %v852
        %893 = vmatprep.subr.mxu0 %v851
        %894 = vmatpush1.msra.mxu0 %v850
        %895 = vmatprep.subr.mxu0 %v849
        %896 = vmatpush1.msra.mxu0 %v848
        %897 = vmatprep.subr.mxu0 %v847
        %898 = vmatpush1.msra.mxu0 %v846
        %899 = vmatprep.subr.mxu0 %v845
        %900 = vmatpush1.msra.mxu0 %v844
        %901 = vmatprep.subr.mxu0 %v843
        %902 = vmatpush1.msra.mxu0 %v842
        %903 = vmatprep.subr.mxu0 %v841
        %904 = vmatpush1.msra.mxu0 %v840
        %905 = vmatprep.subr.mxu0 %v839
        %906 = vmatpush1.msra.mxu0 %v838
        %907 = vmatprep.subr.mxu0 0.0
        %908 = vmatpush2.msra.mxu0 0.0
        %909 = vmatprep.subr.mxu0 0.0
        %910 = vmatpush2.msra.mxu0 0.0
        %911 = vmatprep.subr.mxu0 0.0
        %912 = vmatpush2.msra.mxu0 0.0
        %913 = vmatprep.subr.mxu0 0.0
        %914 = vmatpush2.msra.mxu0 0.0
        %915 = vmatprep.subr.mxu0 0.0
        %916 = vmatpush2.msra.mxu0 0.0
        %917 = vmatprep.subr.mxu0 0.0
        %918 = vmatpush2.msra.mxu0 0.0
        %919 = vmatprep.subr.mxu0 0.0
        %920 = vmatpush2.msra.mxu0 0.0
        %921 = vmatprep.subr.mxu0 0.0
        %922 = vmatpush2.msra.mxu0 0.0
        %923 = vmatprep.subr.mxu0 0.0
        %924 = vmatpush2.msra.mxu0 0.0
        %925 = vmatprep.subr.mxu0 0.0
        %926 = vmatpush2.msra.mxu0 0.0
        %927 = vmatprep.subr.mxu0 0.0
        %928 = vmatpush2.msra.mxu0 0.0
        %929 = vmatprep.subr.mxu0 0.0
        %930 = vmatpush2.msra.mxu0 0.0
        %931 = vmatprep.subr.mxu0 0.0
        %932 = vmatpush2.msra.mxu0 0.0
        %933 = vmatprep.subr.mxu0 0.0
        %934 = vmatpush2.msra.mxu0 0.0
        %935 = vmatprep.subr.mxu0 0.0
        %936 = vmatpush2.msra.mxu0 0.0
        %937 = vmatprep.subr.mxu0 0.0
        %938 = vmatpush2.msra.mxu0 0.0
        %939 = vmatprep.mubr.f32.mxu0 0.0
        %940 = vmatmul.mubr.f32.gmra.mxu0 %v837
        %v941 = vpop.f32.mrf.mxu0
        %v942 = vadd.f32 %v871, %v941
        %v943 = vpop.f32.mrf.mxu0
        %v944 = vadd.f32 %v872, %v943
        %945 = vdwg.mxu0
        %v946 = vmax.f32 %v942, 0.0
        %v947 = vmax.f32 %v944, 0.0
        %v948 = vlaneseq
        %v949 = vshrl.u32 %v948, 7
        %v950 = vsub.s32 0, %v949
        %v951 = vrot.slane %v946, %v950
        %v952 = vlaneseq
        %v953 = vshrl.u32 %v952, 7
        %v954 = vsub.s32 0, %v953
        %v955 = vrot.slane %v947, %v954
        %956 = vset.pattern.permute.xlu0 1
        %957 = vperm.xlu0 %956, %v343
        %v958 = vpop.permute.xlu0 %957
        %v960 = vmul.f32 %v951, %v958
        %v961 = vmul.f32 %v955, %v958
        %962 = vset.pattern.permute.xlu0 2
        %963 = vperm.xlu0 %962, %v343
        %v964 = vpop.permute.xlu0 %963
        %v966 = vadd.f32 %v960, %v964
        %v967 = vadd.f32 %v961, %v964
        %v968 = vsub.f32 0.0, %v966
        %v969 = vsub.f32 0.0, %v967
        %v970 = vmul.f32 %v968, 1.442695
        %v971 = vpow.pop %v970
        %v972 = vmul.f32 %v969, 1.442695
        %v973 = vpow.pop %v972
        %v974 = vadd.f32 %v971, 1.0
        %v975 = vadd.f32 %v973, 1.0
        %v976 = vrcp.pop %v974
        %v977 = vrcp.pop %v975
        %978 = vst [vmem:[%s339] sm:$0xff] %v976
        %979 = vst [vmem:[%s339 + $0x8] sm:$0xff] %v977
        %980 = vset.pattern.permute.xlu0 1
        %981 = vperm.xlu0 %980, %v344
        %v982 = vpop.permute.xlu0 %981
        %v984 = vmul.f32 %v951, %v982
        %v985 = vmul.f32 %v955, %v982
        %986 = vset.pattern.permute.xlu0 2
        %987 = vperm.xlu0 %986, %v344
        %v988 = vpop.permute.xlu0 %987
        %v990 = vadd.f32 %v984, %v988
        %v991 = vadd.f32 %v985, %v988
        %v992 = vsub.f32 0.0, %v990
        %v993 = vsub.f32 0.0, %v991
        %v994 = vmul.f32 %v992, 1.442695
        %v995 = vpow.pop %v994
        %v996 = vmul.f32 %v993, 1.442695
        %v997 = vpow.pop %v996
        %v998 = vadd.f32 %v995, 1.0
        %v999 = vadd.f32 %v997, 1.0
        %v1000 = vrcp.pop %v998
        %v1001 = vrcp.pop %v999
        %1002 = vst [vmem:[%s339 + $0x10] sm:$0xff] %v1000
        %1003 = vst [vmem:[%s339 + $0x18] sm:$0xff] %v1001
        %1004 = vset.pattern.permute.xlu0 1
        %1005 = vperm.xlu0 %1004, %v345
        %v1006 = vpop.permute.xlu0 %1005
        %v1008 = vmul.f32 %v951, %v1006
        %v1009 = vmul.f32 %v955, %v1006
        %1010 = vset.pattern.permute.xlu0 2
        %1011 = vperm.xlu0 %1010, %v345
        %v1012 = vpop.permute.xlu0 %1011
        %v1014 = vadd.f32 %v1008, %v1012
        %v1015 = vadd.f32 %v1009, %v1012
        %v1016 = vsub.f32 0.0, %v1014
        %v1017 = vsub.f32 0.0, %v1015
        %v1018 = vmul.f32 %v1016, 1.442695
        %v1019 = vpow.pop %v1018
        %v1020 = vmul.f32 %v1017, 1.442695
        %v1021 = vpow.pop %v1020
        %v1022 = vadd.f32 %v1019, 1.0
        %v1023 = vadd.f32 %v1021, 1.0
        %v1024 = vrcp.pop %v1022
        %v1025 = vrcp.pop %v1023
        %1026 = vst [vmem:[%s339 + $0x20] sm:$0xff] %v1024
        %1027 = vst [vmem:[%s339 + $0x28] sm:$0xff] %v1025
        %1028 = vset.pattern.permute.xlu0 1
        %1029 = vperm.xlu0 %1028, %v346
        %v1030 = vpop.permute.xlu0 %1029
        %v1032 = vmul.f32 %v951, %v1030
        %v1033 = vmul.f32 %v955, %v1030
        %1034 = vset.pattern.permute.xlu0 2
        %1035 = vperm.xlu0 %1034, %v346
        %v1036 = vpop.permute.xlu0 %1035
        %v1038 = vadd.f32 %v1032, %v1036
        %v1039 = vadd.f32 %v1033, %v1036
        %v1040 = vsub.f32 0.0, %v1038
        %v1041 = vsub.f32 0.0, %v1039
        %v1042 = vmul.f32 %v1040, 1.442695
        %v1043 = vpow.pop %v1042
        %v1044 = vmul.f32 %v1041, 1.442695
        %v1045 = vpow.pop %v1044
        %v1046 = vadd.f32 %v1043, 1.0
        %v1047 = vadd.f32 %v1045, 1.0
        %v1048 = vrcp.pop %v1046
        %v1049 = vrcp.pop %v1047
        %1050 = vst [vmem:[%s339 + $0x30] sm:$0xff] %v1048
        %1051 = vst [vmem:[%s339 + $0x38] sm:$0xff] %v1049
        %1052 = vset.pattern.permute.xlu0 1
        %1053 = vperm.xlu0 %1052, %v347
        %v1054 = vpop.permute.xlu0 %1053
        %v1056 = vmul.f32 %v951, %v1054
        %v1057 = vmul.f32 %v955, %v1054
        %1058 = vset.pattern.permute.xlu0 2
        %1059 = vperm.xlu0 %1058, %v347
        %v1060 = vpop.permute.xlu0 %1059
        %v1062 = vadd.f32 %v1056, %v1060
        %v1063 = vadd.f32 %v1057, %v1060
        %v1064 = vsub.f32 0.0, %v1062
        %v1065 = vsub.f32 0.0, %v1063
        %v1066 = vmul.f32 %v1064, 1.442695
        %v1067 = vpow.pop %v1066
        %v1068 = vmul.f32 %v1065, 1.442695
        %v1069 = vpow.pop %v1068
        %v1070 = vadd.f32 %v1067, 1.0
        %v1071 = vadd.f32 %v1069, 1.0
        %v1072 = vrcp.pop %v1070
        %v1073 = vrcp.pop %v1071
        %1074 = vst [vmem:[%s339 + $0x40] sm:$0xff] %v1072
        %1075 = vst [vmem:[%s339 + $0x48] sm:$0xff] %v1073
        %1076 = vset.pattern.permute.xlu0 1
        %1077 = vperm.xlu0 %1076, %v348
        %v1078 = vpop.permute.xlu0 %1077
        %v1080 = vmul.f32 %v951, %v1078
        %v1081 = vmul.f32 %v955, %v1078
        %1082 = vset.pattern.permute.xlu0 2
        %1083 = vperm.xlu0 %1082, %v348
        %v1084 = vpop.permute.xlu0 %1083
        %v1086 = vadd.f32 %v1080, %v1084
        %v1087 = vadd.f32 %v1081, %v1084
        %v1088 = vsub.f32 0.0, %v1086
        %v1089 = vsub.f32 0.0, %v1087
        %v1090 = vmul.f32 %v1088, 1.442695
        %v1091 = vpow.pop %v1090
        %v1092 = vmul.f32 %v1089, 1.442695
        %v1093 = vpow.pop %v1092
        %v1094 = vadd.f32 %v1091, 1.0
        %v1095 = vadd.f32 %v1093, 1.0
        %v1096 = vrcp.pop %v1094
        %v1097 = vrcp.pop %v1095
        %1098 = vst [vmem:[%s339 + $0x50] sm:$0xff] %v1096
        %1099 = vst [vmem:[%s339 + $0x58] sm:$0xff] %v1097
        %1100 = vset.pattern.permute.xlu0 1
        %1101 = vperm.xlu0 %1100, %v349
        %v1102 = vpop.permute.xlu0 %1101
        %v1104 = vmul.f32 %v951, %v1102
        %v1105 = vmul.f32 %v955, %v1102
        %1106 = vset.pattern.permute.xlu0 2
        %1107 = vperm.xlu0 %1106, %v349
        %v1108 = vpop.permute.xlu0 %1107
        %v1110 = vadd.f32 %v1104, %v1108
        %v1111 = vadd.f32 %v1105, %v1108
        %v1112 = vsub.f32 0.0, %v1110
        %v1113 = vsub.f32 0.0, %v1111
        %v1114 = vmul.f32 %v1112, 1.442695
        %v1115 = vpow.pop %v1114
        %v1116 = vmul.f32 %v1113, 1.442695
        %v1117 = vpow.pop %v1116
        %v1118 = vadd.f32 %v1115, 1.0
        %v1119 = vadd.f32 %v1117, 1.0
        %v1120 = vrcp.pop %v1118
        %v1121 = vrcp.pop %v1119
        %1122 = vst [vmem:[%s339 + $0x60] sm:$0xff] %v1120
        %1123 = vst [vmem:[%s339 + $0x68] sm:$0xff] %v1121
        %1124 = vset.pattern.permute.xlu0 1
        %1125 = vperm.xlu0 %1124, %v350
        %v1126 = vpop.permute.xlu0 %1125
        %v1128 = vmul.f32 %v951, %v1126
        %v1129 = vmul.f32 %v955, %v1126
        %1130 = vset.pattern.permute.xlu0 2
        %1131 = vperm.xlu0 %1130, %v350
        %v1132 = vpop.permute.xlu0 %1131
        %v1134 = vadd.f32 %v1128, %v1132
        %v1135 = vadd.f32 %v1129, %v1132
        %v1136 = vsub.f32 0.0, %v1134
        %v1137 = vsub.f32 0.0, %v1135
        %v1138 = vmul.f32 %v1136, 1.442695
        %v1139 = vpow.pop %v1138
        %v1140 = vmul.f32 %v1137, 1.442695
        %v1141 = vpow.pop %v1140
        %v1142 = vadd.f32 %v1139, 1.0
        %v1143 = vadd.f32 %v1141, 1.0
        %v1144 = vrcp.pop %v1142
        %v1145 = vrcp.pop %v1143
        %1146 = vst [vmem:[%s339 + $0x70] sm:$0xff] %v1144
        %1147 = vst [vmem:[%s339 + $0x78] sm:$0xff] %v1145
        %p1148 = scmp.lt.s32.totalorder %s22, 1
        %s1149 = scalar_select %p1148, %s22, 1
        %s1150 = smul.addr %s1149, 16
        %s1151 = smul.addr %s1150, 8
        %s1152 = scalar_lea.vmem %s7, %s1151
        %p1153 = scmp.lt.s32.totalorder %s22, 1
        %s1154 = scalar_select %p1153, %s22, 1
        %s1155 = scalar_lea.vmem %s8, %s1154
        // Predicated region
        $region57: #{vae_forward.1} parent=47 // pred_check
          %p1156 = pneg %p192
        $region58: #{vae_forward.1} parent=47 // pred_check_branch
          %1158 = sbr.rel (%p1156) target = $region60
        $region59: #{vae_forward.1} parent=47 // pred_region
          _
        $region60: #{vae_forward.1} parent=47 // pred_fallthru
          _
        // Predicated region
        $region61: #{vae_forward.1} parent=47 // pred_check
          %p1159 = pneg %p218
        $region62: #{vae_forward.1} parent=47 // pred_check_branch
          %1161 = sbr.rel (%p1159) target = $region64
        $region63: #{vae_forward.1} parent=47 // pred_region
          _
        $region64: #{vae_forward.1} parent=47 // pred_fallthru
          _
      $region48: #{vae_forward.1} parent=5 // pred_fallthru
        _
      %p1162 = scmp.le.s32.totalorder 2, %s17
      // Predicated region
      $region65: #{vae_forward.1} parent=5 // pred_check
        %p1163 = pneg %p1162
      $region66: #{vae_forward.1} parent=5 // pred_check_branch
        %1165 = sbr.rel (%p1163) target = $region68
      $region67: #{vae_forward.1} parent=5 // pred_region
        %s1166 = ssub.s32 %s17, 2
        // Predicated region
        $region69: #{vae_forward.1} parent=67 // pred_check
          %p1167 = pneg %p198
        $region70: #{vae_forward.1} parent=67 // pred_check_branch
          %1169 = sbr.rel (%p1167) target = $region72
        $region71: #{vae_forward.1} parent=67 // pred_region
          %p1170 = scmp.lt.s32.totalorder %s23, 1
          %s1171 = scalar_select %p1170, %s23, 1
          %s1172 = smul.addr %s1171, 16
          %s1173 = smul.addr %s1172, 8
          %s1174 = scalar_lea.vmem %s7, %s1173
        $region72: #{vae_forward.1} parent=67 // pred_fallthru
          _
        // Predicated region
        $region73: #{vae_forward.1} parent=67 // pred_check
          %p1175 = pneg %p224
        $region74: #{vae_forward.1} parent=67 // pred_check_branch
          %1177 = sbr.rel (%p1175) target = $region76
        $region75: #{vae_forward.1} parent=67 // pred_region
          %p1178 = scmp.lt.s32.totalorder %s23, 1
          %s1179 = scalar_select %p1178, %s23, 1
          %s1180 = scalar_lea.vmem %s8, %s1179
        $region76: #{vae_forward.1} parent=67 // pred_fallthru
          _
      $region68: #{vae_forward.1} parent=5 // pred_fallthru
        _
    $region6: #{vae_forward.1} parent=1 // loop_footer
      %s21 = sadd.s32 1, %s17
    $region7: #{vae_forward.1} parent=1 // loop_footer_branch
      %16 = sbr.rel target = $region3
    $region8: #{vae_forward.1} parent=1 // loop_exit
      _
    %1181 = vsyncpa [#allocation3], 1
    %s1182 = scalar_lea.sflag [#allocation3], 1
    %1183 = vsyncpa %s1182, 1
    %1184 = vsyncpa [#allocation5], 1

</llo_original>
